<compile_context>
chip_gen: v5e
topology: v5e:2x2
jax: 0.10.0
libtpu: 0.0.40
codegen_flags: <defaults>
</compile_context>

<pallas_src>
import jax
import jax.numpy as jnp
from jax.experimental import pallas as pl
from jax.experimental.pallas import tpu as pltpu


def _round_up(x, m):
    return ((x + m - 1) // m) * m


# ----------------------------------------------------------------------------
# Fused Pallas kernel: all GIN layers (+ folded BatchNorm, + ReLU except last)
# ----------------------------------------------------------------------------
def _gnn_node_kernel(seg_ref, src_ref,                        # scalar prefetch (SMEM)
                     h0_ref, ea_ref, eps_ref,                 # inputs
                     we_ref, be_ref, w1_ref, b1_ref, w2_ref, b2_ref,
                     out_ref,                                 # output (VMEM-resident across layers)
                     acc, eemb, gsrc):                        # VMEM scratch
    l = pl.program_id(0)
    n_layers = pl.num_programs(0)
    n_edges_p = eemb.shape[0]      # static padded edge count
    n_nodes_p = acc.shape[0]       # static padded node count

    # Layer 0: node embeddings seed the resident feature buffer (the output
    # block: constant block index along the layer axis -> stays in VMEM, HBM
    # writeback happens once at the end of the grid).
    @pl.when(l == 0)
    def _():
        out_ref[...] = h0_ref[...]

    # edge_encoder: Linear(7 -> H) in bulk on the MXU (feature dim padded to 8).
    eemb[...] = jnp.dot(ea_ref[...], we_ref[0],
                        preferred_element_type=jnp.float32) + be_ref[0]

    # --- message passing --------------------------------------------------
    # Stage 1a: gather h[src[e]]  (static trip count, fully unrolled at trace
    # time; pad edges read node row 0 — harmless, their rows are never
    # aggregated because the destination segments below only cover real edges).
    for e in range(n_edges_p):
        gsrc[pl.ds(e, 1), :] = out_ref[pl.ds(src_ref[e], 1), :]

    # Stage 1b: bulk message compute on full (8,128) vregs:
    #   msg[e] = relu(h[src[e]] + edge_emb[e])     (stored back into eemb)
    eemb[...] = jnp.maximum(gsrc[...] + eemb[...], 0.0)

    # Stage 2: (1 + eps) * x in bulk, then dst-sorted segmented scatter-add.
    # Each destination row d accumulates its contiguous segment of sorted
    # messages at a STATIC row address.
    acc[...] = (1.0 + eps_ref[l]) * out_ref[...]
    for d in range(n_nodes_p):
        def seg_body(e, c, d=d):
            acc[pl.ds(d, 1), :] = acc[pl.ds(d, 1), :] + eemb[pl.ds(e, 1), :]
            return c
        jax.lax.fori_loop(seg_ref[d], seg_ref[d + 1], seg_body, 0)

    # --- GIN MLP: Linear(H,2H) -> [BN folded] -> ReLU -> Linear(2H,H) -> [BN folded]
    t = jnp.maximum(
        jnp.dot(acc[...], w1_ref[0], preferred_element_type=jnp.float32) + b1_ref[0],
        0.0)
    u = jnp.dot(t, w2_ref[0], preferred_element_type=jnp.float32) + b2_ref[0]

    # F.relu on all but the last layer; dropout = identity in eval mode.
    @pl.when(l != n_layers - 1)
    def _():
        out_ref[...] = jnp.maximum(u, 0.0)

    @pl.when(l == n_layers - 1)
    def _():
        out_ref[...] = u


def _gnn_node_pallas(seg, src, h0, ea, eps_s,
                     we_s, be_s, w1_s, b1_s, w2_s, b2_s):
    L = we_s.shape[0]
    Np, Hp = h0.shape
    Ep = ea.shape[0]
    H2p = w1_s.shape[2]

    def full_spec(shape):                      # layer-invariant operand, fetched once
        return pl.BlockSpec(shape, lambda l, *_: (0,) * len(shape))

    def layer_spec(shape):                     # stacked per-layer weights
        return pl.BlockSpec((1,) + shape, lambda l, *_: (l,) + (0,) * len(shape))

    smem_spec = pl.BlockSpec(memory_space=pltpu.MemorySpace.SMEM)

    grid_spec = pltpu.PrefetchScalarGridSpec(
        num_scalar_prefetch=2,                 # seg offsets, src indices -> SMEM
        grid=(L,),
        in_specs=[
            full_spec((Np, Hp)),               # h0 (node embeddings)
            full_spec((Ep, 8)),                # edge_attr (sorted by dst, padded 7 -> 8)
            smem_spec,                         # eps per layer
            layer_spec((8, Hp)),               # edge_encoder W
            layer_spec((1, Hp)),               # edge_encoder b
            layer_spec((Hp, H2p)),             # MLP W1 (BN1 folded)
            layer_spec((1, H2p)),              # MLP b1
            layer_spec((H2p, Hp)),             # MLP W2 (outer BN folded)
            layer_spec((1, Hp)),               # MLP b2
        ],
        out_specs=pl.BlockSpec((Np, Hp), lambda l, *_: (0, 0)),   # resident across layers
        scratch_shapes=[
            pltpu.VMEM((Np, Hp), jnp.float32),   # aggregation accumulator
            pltpu.VMEM((Ep, Hp), jnp.float32),   # edge embeddings / messages
            pltpu.VMEM((Ep, Hp), jnp.float32),   # gathered source features
        ],
    )

    # Raise the scoped VMEM limit: ~3/4 of physical VMEM, capped at 100 MiB
    # (keeps v7x's smaller 64 MiB budget safe while letting v5e/v6e use ~96 MiB).
    try:
        vmem_cap = int(pltpu.get_tpu_info().vmem_capacity_bytes)
        vmem_limit = min(vmem_cap * 3 // 4, 100 * 1024 * 1024)
    except Exception:
        vmem_limit = 64 * 1024 * 1024

    return pl.pallas_call(
        _gnn_node_kernel,
        out_shape=jax.ShapeDtypeStruct((Np, Hp), jnp.float32),
        grid_spec=grid_spec,
        compiler_params=pltpu.CompilerParams(
            dimension_semantics=("arbitrary",),     # layer loop carries state
            vmem_limit_bytes=vmem_limit,
        ),
    )(seg, src, h0, ea, eps_s, we_s, be_s, w1_s, b1_s, w2_s, b2_s)


# ----------------------------------------------------------------------------
# Parameter init (deterministic, mirrors shapes of the PyTorch module)
# ----------------------------------------------------------------------------
def _linear_init(key, fan_in, fan_out):
    kw, kb = jax.random.split(key)
    bound = 1.0 / jnp.sqrt(fan_in)
    w = jax.random.uniform(kw, (fan_in, fan_out), jnp.float32, -bound, bound)
    b = jax.random.uniform(kb, (1, fan_out), jnp.float32, -bound, bound)
    return w, b


def _fold_bn(dim, bn_eps=1e-5):
    # PyTorch defaults: gamma=1, beta=0, running_mean=0, running_var=1 (eval mode)
    gamma = jnp.ones((1, dim), jnp.float32)
    beta = jnp.zeros((1, dim), jnp.float32)
    rmean = jnp.zeros((1, dim), jnp.float32)
    rvar = jnp.ones((1, dim), jnp.float32)
    sc = gamma / jnp.sqrt(rvar + bn_eps)
    sh = beta - rmean * sc
    return sc, sh


def init_gnn_node_params(key, n_layers, hid_dim):
    keys = jax.random.split(key, 1 + 3 * n_layers)
    params = {"node_emb": jax.random.normal(keys[0], (1, hid_dim), jnp.float32),
              "layers": []}
    for layer in range(n_layers):
        k_e, k_1, k_2 = keys[1 + 3 * layer: 4 + 3 * layer]
        edge_w, edge_b = _linear_init(k_e, 7, hid_dim)
        w1, b1 = _linear_init(k_1, hid_dim, 2 * hid_dim)
        w2, b2 = _linear_init(k_2, 2 * hid_dim, hid_dim)
        bn1_sc, bn1_sh = _fold_bn(2 * hid_dim)   # BN inside GIN MLP
        bn2_sc, bn2_sh = _fold_bn(hid_dim)       # per-layer batch_norms[layer]
        params["layers"].append({
            "edge_w": edge_w, "edge_b": edge_b,
            "eps": jnp.zeros((), jnp.float32),   # torch.nn.Parameter([0])
            "w1": w1, "b1": b1, "bn1_sc": bn1_sc, "bn1_sh": bn1_sh,
            "w2": w2, "b2": b2, "bn2_sc": bn2_sc, "bn2_sh": bn2_sh,
        })
    return params


# ----------------------------------------------------------------------------
# GNN_node forward (JK='last', residual=False, eval mode)
# ----------------------------------------------------------------------------
def gnn_node_forward(params, x_idx, edge_index, edge_attr):
    layers = params["layers"]
    H = params["node_emb"].shape[1]
    N = x_idx.shape[0]
    E = edge_attr.shape[0]

    # Lane-dense / sublane-aligned padded sizes.
    Hp = _round_up(H, 128)
    H2p = _round_up(2 * H, 128)
    Np = _round_up(N, 8)
    Ep = _round_up(E, 8)

    # node_encoder: Embedding(1, H) lookup (all indices are 0), zero-padded.
    h0 = params["node_emb"][x_idx]                                    # [N, H]
    h0 = jnp.zeros((Np, Hp), jnp.float32).at[:N, :H].set(h0)

    # Sort edges by destination so the in-kernel aggregation is a contiguous
    # per-destination segment sum (message order within a segment is irrelevant
    # for sum aggregation).
    src0 = edge_index[0].astype(jnp.int32)
    dst0 = edge_index[1].astype(jnp.int32)
    order = jnp.argsort(dst0)
    src_sorted = src0[order]
    dst_sorted = dst0[order]
    ea_sorted = edge_attr[order]

    # edge attributes / source indices, padded (7 -> 8 features, E -> Ep edges).
    # Pad edges get src = 0: they only produce garbage rows in the message
    # buffer that no destination segment ever reads.
    ea = jnp.zeros((Ep, 8), jnp.float32).at[:E, :7].set(ea_sorted)
    src = jnp.zeros((Ep,), jnp.int32).at[:E].set(src_sorted)

    # Per-destination segment offsets into the sorted edge list (length Np+1).
    # seg[d] == E for every pad node d >= N, so pad nodes / pad edges are
    # excluded from aggregation and the static edge trip count is safe.
    seg = jnp.searchsorted(dst_sorted, jnp.arange(Np + 1, dtype=jnp.int32),
                           side='left').astype(jnp.int32)

    # Stack per-layer weights; fold eval-mode BatchNorms into the Linears; pad.
    def prep(lp):
        we = jnp.zeros((8, Hp), jnp.float32).at[:7, :H].set(lp["edge_w"])
        be = jnp.zeros((1, Hp), jnp.float32).at[:, :H].set(lp["edge_b"])
        w1f = lp["w1"] * lp["bn1_sc"]
        b1f = lp["b1"] * lp["bn1_sc"] + lp["bn1_sh"]
        w2f = lp["w2"] * lp["bn2_sc"]
        b2f = lp["b2"] * lp["bn2_sc"] + lp["bn2_sh"]
        w1 = jnp.zeros((Hp, H2p), jnp.float32).at[:H, :2 * H].set(w1f)
        b1 = jnp.zeros((1, H2p), jnp.float32).at[:, :2 * H].set(b1f)
        w2 = jnp.zeros((H2p, Hp), jnp.float32).at[:2 * H, :H].set(w2f)
        b2 = jnp.zeros((1, Hp), jnp.float32).at[:, :H].set(b2f)
        return we, be, w1, b1, w2, b2, lp["eps"]

    prepped = [prep(lp) for lp in layers]
    we_s = jnp.stack([p[0] for p in prepped])
    be_s = jnp.stack([p[1] for p in prepped])
    w1_s = jnp.stack([p[2] for p in prepped])
    b1_s = jnp.stack([p[3] for p in prepped])
    w2_s = jnp.stack([p[4] for p in prepped])
    b2_s = jnp.stack([p[5] for p in prepped])
    eps_s = jnp.stack([p[6] for p in prepped])                        # [L]

    out = _gnn_node_pallas(seg, src, h0, ea, eps_s,
                           we_s, be_s, w1_s, b1_s, w2_s, b2_s)
    return out[:N, :H]     # JK == 'last'


# ----------------------------------------------------------------------------
# Main
# ----------------------------------------------------------------------------
if __name__ == "__main__":
    key = jax.random.PRNGKey(0)
    k_param, k_ei, k_ea = jax.random.split(key, 3)

    N, E, HID, N_LAYERS = 16, 32, 32, 2

    params = init_gnn_node_params(k_param, N_LAYERS, HID)

    x_idx = jnp.zeros((N,), dtype=jnp.int32)                  # Embedding(1, H) indices
    edge_index = jax.random.randint(k_ei, (2, E), 0, N, dtype=jnp.int32)
    edge_attr = jax.random.normal(k_ea, (E, 7), dtype=jnp.float32)

    out = gnn_node_forward(params, x_idx, edge_index, edge_attr)
    out = jax.block_until_ready(out)
    assert out.shape == (N, HID) and out.dtype == jnp.float32
    print("KERNEL_OK")
</pallas_src>

<mosaic_0001>
module attributes {stable_mosaic.version = 11 : i64} {
  func.func @_gnn_node_kernel(%arg0: i32, %arg1: memref<17xi32, #tpu.memory_space<smem>>, %arg2: memref<32xi32, #tpu.memory_space<smem>>, %arg3: memref<16x128xf32, #tpu.memory_space<vmem>>, %arg4: memref<32x8xf32, #tpu.memory_space<vmem>>, %arg5: memref<2xf32, #tpu.memory_space<smem>>, %arg6: memref<1x8x128xf32, #tpu.memory_space<vmem>>, %arg7: memref<1x1x128xf32, #tpu.memory_space<vmem>>, %arg8: memref<1x128x128xf32, #tpu.memory_space<vmem>>, %arg9: memref<1x1x128xf32, #tpu.memory_space<vmem>>, %arg10: memref<1x128x128xf32, #tpu.memory_space<vmem>>, %arg11: memref<1x1x128xf32, #tpu.memory_space<vmem>>, %arg12: memref<16x128xf32, #tpu.memory_space<vmem>>, %arg13: memref<16x128xf32, #tpu.memory_space<vmem>>, %arg14: memref<32x128xf32, #tpu.memory_space<vmem>>, %arg15: memref<32x128xf32, #tpu.memory_space<vmem>>) attributes {dimension_semantics = [#tpu.dimension_semantics<arbitrary>], iteration_bounds = array<i64: 2>, scalar_prefetch = 2 : i64, scratch_operands = 3 : i64, tpu.core_type = #tpu.core_type<tc>, window_params = [{pipeline_mode = #tpu.pipeline_mode<synchronous>, transform_indices = @transform_0, window_bounds = array<i64: 16, 128>}, {pipeline_mode = #tpu.pipeline_mode<synchronous>, transform_indices = @transform_1, window_bounds = array<i64: 32, 8>}, {transform_indices = @transform_2, window_bounds = array<i64: 2>}, {transform_indices = @transform_3, window_bounds = array<i64: 1, 8, 128>}, {transform_indices = @transform_4, window_bounds = array<i64: 1, 1, 128>}, {transform_indices = @transform_5, window_bounds = array<i64: 1, 128, 128>}, {transform_indices = @transform_6, window_bounds = array<i64: 1, 1, 128>}, {transform_indices = @transform_7, window_bounds = array<i64: 1, 128, 128>}, {transform_indices = @transform_8, window_bounds = array<i64: 1, 1, 128>}, {pipeline_mode = #tpu.pipeline_mode<synchronous>, transform_indices = @transform_9, window_bounds = array<i64: 16, 128>}]} {
    %c0_i32 = arith.constant 0 : i32
    %0 = arith.cmpi eq, %arg0, %c0_i32 : i32
    %1 = arith.extui %0 : i1 to i32
    %c0_i32_0 = arith.constant 0 : i32
    %2 = arith.cmpi ne, %1, %c0_i32_0 : i32
    scf.if %2 {
      %c0_203 = arith.constant 0 : index
      %c0_204 = arith.constant 0 : index
      %240 = vector.load %arg3[%c0_203, %c0_204] : memref<16x128xf32, #tpu.memory_space<vmem>>, vector<16x128xf32>
      %c0_205 = arith.constant 0 : index
      %c0_206 = arith.constant 0 : index
      %241 = vector.load %arg12[%c0_205, %c0_206] : memref<16x128xf32, #tpu.memory_space<vmem>>, vector<16x128xf32>
      tpu.vector_store %arg12[%c0_205, %c0_206], %240 {strides = array<i32>} : memref<16x128xf32, #tpu.memory_space<vmem>>, vector<16x128xf32>,
    } else {
    }
    %c0 = arith.constant 0 : index
    %c0_1 = arith.constant 0 : index
    %3 = vector.load %arg4[%c0, %c0_1] : memref<32x8xf32, #tpu.memory_space<vmem>>, vector<32x8xf32>
    %c0_2 = arith.constant 0 : index
    %c0_3 = arith.constant 0 : index
    %c0_4 = arith.constant 0 : index
    %4 = vector.load %arg6[%c0_2, %c0_3, %c0_4] : memref<1x8x128xf32, #tpu.memory_space<vmem>>, vector<1x8x128xf32>
    %5 = vector.shape_cast %4 : vector<1x8x128xf32> to vector<8x128xf32>
    %cst = arith.constant dense<0.000000e+00> : vector<32x128xf32>
    %6 = tpu.matmul %3, %5, %cst {dimension_numbers = #tpu.dot_dimension_numbers<[1], [0], [0], [1], [0, 0, 1, 1], [], []>} : vector<32x8xf32>, vector<8x128xf32>, vector<32x128xf32> -> vector<32x128xf32>
    %c0_5 = arith.constant 0 : index
    %c0_6 = arith.constant 0 : index
    %c0_7 = arith.constant 0 : index
    %7 = vector.load %arg7[%c0_5, %c0_6, %c0_7] : memref<1x1x128xf32, #tpu.memory_space<vmem>>, vector<1x1x128xf32>
    %8 = vector.shape_cast %7 : vector<1x1x128xf32> to vector<1x128xf32>
    %9 = vector.broadcast %8 : vector<1x128xf32> to vector<32x128xf32>
    %10 = arith.addf %6, %9 : vector<32x128xf32>
    %c0_8 = arith.constant 0 : index
    %c0_9 = arith.constant 0 : index
    %11 = vector.load %arg14[%c0_8, %c0_9] : memref<32x128xf32, #tpu.memory_space<vmem>>, vector<32x128xf32>
    tpu.vector_store %arg14[%c0_8, %c0_9], %10 {strides = array<i32>} : memref<32x128xf32, #tpu.memory_space<vmem>>, vector<32x128xf32>,
    %c0_10 = arith.constant 0 : index
    %12 = memref.load %arg2[%c0_10] : memref<32xi32, #tpu.memory_space<smem>>
    %13 = arith.index_cast %12 : i32 to index
    %c0_11 = arith.constant 0 : index
    %14 = vector.load %arg12[%13, %c0_11] : memref<16x128xf32, #tpu.memory_space<vmem>>, vector<1x128xf32>
    %c0_12 = arith.constant 0 : index
    %c0_13 = arith.constant 0 : index
    %15 = vector.load %arg15[%c0_12, %c0_13] : memref<32x128xf32, #tpu.memory_space<vmem>>, vector<1x128xf32>
    tpu.vector_store %arg15[%c0_12, %c0_13], %14 {strides = array<i32>} : memref<32x128xf32, #tpu.memory_space<vmem>>, vector<1x128xf32>,
    %c1 = arith.constant 1 : index
    %16 = memref.load %arg2[%c1] : memref<32xi32, #tpu.memory_space<smem>>
    %17 = arith.index_cast %16 : i32 to index
    %c0_14 = arith.constant 0 : index
    %18 = vector.load %arg12[%17, %c0_14] : memref<16x128xf32, #tpu.memory_space<vmem>>, vector<1x128xf32>
    %c1_15 = arith.constant 1 : index
    %c0_16 = arith.constant 0 : index
    %19 = vector.load %arg15[%c1_15, %c0_16] : memref<32x128xf32, #tpu.memory_space<vmem>>, vector<1x128xf32>
    tpu.vector_store %arg15[%c1_15, %c0_16], %18 {strides = array<i32>} : memref<32x128xf32, #tpu.memory_space<vmem>>, vector<1x128xf32>,
    %c2 = arith.constant 2 : index
    %20 = memref.load %arg2[%c2] : memref<32xi32, #tpu.memory_space<smem>>
    %21 = arith.index_cast %20 : i32 to index
    %c0_17 = arith.constant 0 : index
    %22 = vector.load %arg12[%21, %c0_17] : memref<16x128xf32, #tpu.memory_space<vmem>>, vector<1x128xf32>
    %c2_18 = arith.constant 2 : index
    %c0_19 = arith.constant 0 : index
    %23 = vector.load %arg15[%c2_18, %c0_19] : memref<32x128xf32, #tpu.memory_space<vmem>>, vector<1x128xf32>
    tpu.vector_store %arg15[%c2_18, %c0_19], %22 {strides = array<i32>} : memref<32x128xf32, #tpu.memory_space<vmem>>, vector<1x128xf32>,
    %c3 = arith.constant 3 : index
    %24 = memref.load %arg2[%c3] : memref<32xi32, #tpu.memory_space<smem>>
    %25 = arith.index_cast %24 : i32 to index
    %c0_20 = arith.constant 0 : index
    %26 = vector.load %arg12[%25, %c0_20] : memref<16x128xf32, #tpu.memory_space<vmem>>, vector<1x128xf32>
    %c3_21 = arith.constant 3 : index
    %c0_22 = arith.constant 0 : index
    %27 = vector.load %arg15[%c3_21, %c0_22] : memref<32x128xf32, #tpu.memory_space<vmem>>, vector<1x128xf32>
    tpu.vector_store %arg15[%c3_21, %c0_22], %26 {strides = array<i32>} : memref<32x128xf32, #tpu.memory_space<vmem>>, vector<1x128xf32>,
    %c4 = arith.constant 4 : index
    %28 = memref.load %arg2[%c4] : memref<32xi32, #tpu.memory_space<smem>>
    %29 = arith.index_cast %28 : i32 to index
    %c0_23 = arith.constant 0 : index
    %30 = vector.load %arg12[%29, %c0_23] : memref<16x128xf32, #tpu.memory_space<vmem>>, vector<1x128xf32>
    %c4_24 = arith.constant 4 : index
    %c0_25 = arith.constant 0 : index
    %31 = vector.load %arg15[%c4_24, %c0_25] : memref<32x128xf32, #tpu.memory_space<vmem>>, vector<1x128xf32>
    tpu.vector_store %arg15[%c4_24, %c0_25], %30 {strides = array<i32>} : memref<32x128xf32, #tpu.memory_space<vmem>>, vector<1x128xf32>,
    %c5 = arith.constant 5 : index
    %32 = memref.load %arg2[%c5] : memref<32xi32, #tpu.memory_space<smem>>
    %33 = arith.index_cast %32 : i32 to index
    %c0_26 = arith.constant 0 : index
    %34 = vector.load %arg12[%33, %c0_26] : memref<16x128xf32, #tpu.memory_space<vmem>>, vector<1x128xf32>
    %c5_27 = arith.constant 5 : index
    %c0_28 = arith.constant 0 : index
    %35 = vector.load %arg15[%c5_27, %c0_28] : memref<32x128xf32, #tpu.memory_space<vmem>>, vector<1x128xf32>
    tpu.vector_store %arg15[%c5_27, %c0_28], %34 {strides = array<i32>} : memref<32x128xf32, #tpu.memory_space<vmem>>, vector<1x128xf32>,
    %c6 = arith.constant 6 : index
    %36 = memref.load %arg2[%c6] : memref<32xi32, #tpu.memory_space<smem>>
    %37 = arith.index_cast %36 : i32 to index
    %c0_29 = arith.constant 0 : index
    %38 = vector.load %arg12[%37, %c0_29] : memref<16x128xf32, #tpu.memory_space<vmem>>, vector<1x128xf32>
    %c6_30 = arith.constant 6 : index
    %c0_31 = arith.constant 0 : index
    %39 = vector.load %arg15[%c6_30, %c0_31] : memref<32x128xf32, #tpu.memory_space<vmem>>, vector<1x128xf32>
    tpu.vector_store %arg15[%c6_30, %c0_31], %38 {strides = array<i32>} : memref<32x128xf32, #tpu.memory_space<vmem>>, vector<1x128xf32>,
    %c7 = arith.constant 7 : index
    %40 = memref.load %arg2[%c7] : memref<32xi32, #tpu.memory_space<smem>>
    %41 = arith.index_cast %40 : i32 to index
    %c0_32 = arith.constant 0 : index
    %42 = vector.load %arg12[%41, %c0_32] : memref<16x128xf32, #tpu.memory_space<vmem>>, vector<1x128xf32>
    %c7_33 = arith.constant 7 : index
    %c0_34 = arith.constant 0 : index
    %43 = vector.load %arg15[%c7_33, %c0_34] : memref<32x128xf32, #tpu.memory_space<vmem>>, vector<1x128xf32>
    tpu.vector_store %arg15[%c7_33, %c0_34], %42 {strides = array<i32>} : memref<32x128xf32, #tpu.memory_space<vmem>>, vector<1x128xf32>,
    %c8 = arith.constant 8 : index
    %44 = memref.load %arg2[%c8] : memref<32xi32, #tpu.memory_space<smem>>
    %45 = arith.index_cast %44 : i32 to index
    %c0_35 = arith.constant 0 : index
    %46 = vector.load %arg12[%45, %c0_35] : memref<16x128xf32, #tpu.memory_space<vmem>>, vector<1x128xf32>
    %c8_36 = arith.constant 8 : index
    %c0_37 = arith.constant 0 : index
    %47 = vector.load %arg15[%c8_36, %c0_37] : memref<32x128xf32, #tpu.memory_space<vmem>>, vector<1x128xf32>
    tpu.vector_store %arg15[%c8_36, %c0_37], %46 {strides = array<i32>} : memref<32x128xf32, #tpu.memory_space<vmem>>, vector<1x128xf32>,
    %c9 = arith.constant 9 : index
    %48 = memref.load %arg2[%c9] : memref<32xi32, #tpu.memory_space<smem>>
    %49 = arith.index_cast %48 : i32 to index
    %c0_38 = arith.constant 0 : index
    %50 = vector.load %arg12[%49, %c0_38] : memref<16x128xf32, #tpu.memory_space<vmem>>, vector<1x128xf32>
    %c9_39 = arith.constant 9 : index
    %c0_40 = arith.constant 0 : index
    %51 = vector.load %arg15[%c9_39, %c0_40] : memref<32x128xf32, #tpu.memory_space<vmem>>, vector<1x128xf32>
    tpu.vector_store %arg15[%c9_39, %c0_40], %50 {strides = array<i32>} : memref<32x128xf32, #tpu.memory_space<vmem>>, vector<1x128xf32>,
    %c10 = arith.constant 10 : index
    %52 = memref.load %arg2[%c10] : memref<32xi32, #tpu.memory_space<smem>>
    %53 = arith.index_cast %52 : i32 to index
    %c0_41 = arith.constant 0 : index
    %54 = vector.load %arg12[%53, %c0_41] : memref<16x128xf32, #tpu.memory_space<vmem>>, vector<1x128xf32>
    %c10_42 = arith.constant 10 : index
    %c0_43 = arith.constant 0 : index
    %55 = vector.load %arg15[%c10_42, %c0_43] : memref<32x128xf32, #tpu.memory_space<vmem>>, vector<1x128xf32>
    tpu.vector_store %arg15[%c10_42, %c0_43], %54 {strides = array<i32>} : memref<32x128xf32, #tpu.memory_space<vmem>>, vector<1x128xf32>,
    %c11 = arith.constant 11 : index
    %56 = memref.load %arg2[%c11] : memref<32xi32, #tpu.memory_space<smem>>
    %57 = arith.index_cast %56 : i32 to index
    %c0_44 = arith.constant 0 : index
    %58 = vector.load %arg12[%57, %c0_44] : memref<16x128xf32, #tpu.memory_space<vmem>>, vector<1x128xf32>
    %c11_45 = arith.constant 11 : index
    %c0_46 = arith.constant 0 : index
    %59 = vector.load %arg15[%c11_45, %c0_46] : memref<32x128xf32, #tpu.memory_space<vmem>>, vector<1x128xf32>
    tpu.vector_store %arg15[%c11_45, %c0_46], %58 {strides = array<i32>} : memref<32x128xf32, #tpu.memory_space<vmem>>, vector<1x128xf32>,
    %c12 = arith.constant 12 : index
    %60 = memref.load %arg2[%c12] : memref<32xi32, #tpu.memory_space<smem>>
    %61 = arith.index_cast %60 : i32 to index
    %c0_47 = arith.constant 0 : index
    %62 = vector.load %arg12[%61, %c0_47] : memref<16x128xf32, #tpu.memory_space<vmem>>, vector<1x128xf32>
    %c12_48 = arith.constant 12 : index
    %c0_49 = arith.constant 0 : index
    %63 = vector.load %arg15[%c12_48, %c0_49] : memref<32x128xf32, #tpu.memory_space<vmem>>, vector<1x128xf32>
    tpu.vector_store %arg15[%c12_48, %c0_49], %62 {strides = array<i32>} : memref<32x128xf32, #tpu.memory_space<vmem>>, vector<1x128xf32>,
    %c13 = arith.constant 13 : index
    %64 = memref.load %arg2[%c13] : memref<32xi32, #tpu.memory_space<smem>>
    %65 = arith.index_cast %64 : i32 to index
    %c0_50 = arith.constant 0 : index
    %66 = vector.load %arg12[%65, %c0_50] : memref<16x128xf32, #tpu.memory_space<vmem>>, vector<1x128xf32>
    %c13_51 = arith.constant 13 : index
    %c0_52 = arith.constant 0 : index
    %67 = vector.load %arg15[%c13_51, %c0_52] : memref<32x128xf32, #tpu.memory_space<vmem>>, vector<1x128xf32>
    tpu.vector_store %arg15[%c13_51, %c0_52], %66 {strides = array<i32>} : memref<32x128xf32, #tpu.memory_space<vmem>>, vector<1x128xf32>,
    %c14 = arith.constant 14 : index
    %68 = memref.load %arg2[%c14] : memref<32xi32, #tpu.memory_space<smem>>
    %69 = arith.index_cast %68 : i32 to index
    %c0_53 = arith.constant 0 : index
    %70 = vector.load %arg12[%69, %c0_53] : memref<16x128xf32, #tpu.memory_space<vmem>>, vector<1x128xf32>
    %c14_54 = arith.constant 14 : index
    %c0_55 = arith.constant 0 : index
    %71 = vector.load %arg15[%c14_54, %c0_55] : memref<32x128xf32, #tpu.memory_space<vmem>>, vector<1x128xf32>
    tpu.vector_store %arg15[%c14_54, %c0_55], %70 {strides = array<i32>} : memref<32x128xf32, #tpu.memory_space<vmem>>, vector<1x128xf32>,
    %c15 = arith.constant 15 : index
    %72 = memref.load %arg2[%c15] : memref<32xi32, #tpu.memory_space<smem>>
    %73 = arith.index_cast %72 : i32 to index
    %c0_56 = arith.constant 0 : index
    %74 = vector.load %arg12[%73, %c0_56] : memref<16x128xf32, #tpu.memory_space<vmem>>, vector<1x128xf32>
    %c15_57 = arith.constant 15 : index
    %c0_58 = arith.constant 0 : index
    %75 = vector.load %arg15[%c15_57, %c0_58] : memref<32x128xf32, #tpu.memory_space<vmem>>, vector<1x128xf32>
    tpu.vector_store %arg15[%c15_57, %c0_58], %74 {strides = array<i32>} : memref<32x128xf32, #tpu.memory_space<vmem>>, vector<1x128xf32>,
    %c16 = arith.constant 16 : index
    %76 = memref.load %arg2[%c16] : memref<32xi32, #tpu.memory_space<smem>>
    %77 = arith.index_cast %76 : i32 to index
    %c0_59 = arith.constant 0 : index
    %78 = vector.load %arg12[%77, %c0_59] : memref<16x128xf32, #tpu.memory_space<vmem>>, vector<1x128xf32>
    %c16_60 = arith.constant 16 : index
    %c0_61 = arith.constant 0 : index
    %79 = vector.load %arg15[%c16_60, %c0_61] : memref<32x128xf32, #tpu.memory_space<vmem>>, vector<1x128xf32>
    tpu.vector_store %arg15[%c16_60, %c0_61], %78 {strides = array<i32>} : memref<32x128xf32, #tpu.memory_space<vmem>>, vector<1x128xf32>,
    %c17 = arith.constant 17 : index
    %80 = memref.load %arg2[%c17] : memref<32xi32, #tpu.memory_space<smem>>
    %81 = arith.index_cast %80 : i32 to index
    %c0_62 = arith.constant 0 : index
    %82 = vector.load %arg12[%81, %c0_62] : memref<16x128xf32, #tpu.memory_space<vmem>>, vector<1x128xf32>
    %c17_63 = arith.constant 17 : index
    %c0_64 = arith.constant 0 : index
    %83 = vector.load %arg15[%c17_63, %c0_64] : memref<32x128xf32, #tpu.memory_space<vmem>>, vector<1x128xf32>
    tpu.vector_store %arg15[%c17_63, %c0_64], %82 {strides = array<i32>} : memref<32x128xf32, #tpu.memory_space<vmem>>, vector<1x128xf32>,
    %c18 = arith.constant 18 : index
    %84 = memref.load %arg2[%c18] : memref<32xi32, #tpu.memory_space<smem>>
    %85 = arith.index_cast %84 : i32 to index
    %c0_65 = arith.constant 0 : index
    %86 = vector.load %arg12[%85, %c0_65] : memref<16x128xf32, #tpu.memory_space<vmem>>, vector<1x128xf32>
    %c18_66 = arith.constant 18 : index
    %c0_67 = arith.constant 0 : index
    %87 = vector.load %arg15[%c18_66, %c0_67] : memref<32x128xf32, #tpu.memory_space<vmem>>, vector<1x128xf32>
    tpu.vector_store %arg15[%c18_66, %c0_67], %86 {strides = array<i32>} : memref<32x128xf32, #tpu.memory_space<vmem>>, vector<1x128xf32>,
    %c19 = arith.constant 19 : index
    %88 = memref.load %arg2[%c19] : memref<32xi32, #tpu.memory_space<smem>>
    %89 = arith.index_cast %88 : i32 to index
    %c0_68 = arith.constant 0 : index
    %90 = vector.load %arg12[%89, %c0_68] : memref<16x128xf32, #tpu.memory_space<vmem>>, vector<1x128xf32>
    %c19_69 = arith.constant 19 : index
    %c0_70 = arith.constant 0 : index
    %91 = vector.load %arg15[%c19_69, %c0_70] : memref<32x128xf32, #tpu.memory_space<vmem>>, vector<1x128xf32>
    tpu.vector_store %arg15[%c19_69, %c0_70], %90 {strides = array<i32>} : memref<32x128xf32, #tpu.memory_space<vmem>>, vector<1x128xf32>,
    %c20 = arith.constant 20 : index
    %92 = memref.load %arg2[%c20] : memref<32xi32, #tpu.memory_space<smem>>
    %93 = arith.index_cast %92 : i32 to index
    %c0_71 = arith.constant 0 : index
    %94 = vector.load %arg12[%93, %c0_71] : memref<16x128xf32, #tpu.memory_space<vmem>>, vector<1x128xf32>
    %c20_72 = arith.constant 20 : index
    %c0_73 = arith.constant 0 : index
    %95 = vector.load %arg15[%c20_72, %c0_73] : memref<32x128xf32, #tpu.memory_space<vmem>>, vector<1x128xf32>
    tpu.vector_store %arg15[%c20_72, %c0_73], %94 {strides = array<i32>} : memref<32x128xf32, #tpu.memory_space<vmem>>, vector<1x128xf32>,
    %c21 = arith.constant 21 : index
    %96 = memref.load %arg2[%c21] : memref<32xi32, #tpu.memory_space<smem>>
    %97 = arith.index_cast %96 : i32 to index
    %c0_74 = arith.constant 0 : index
    %98 = vector.load %arg12[%97, %c0_74] : memref<16x128xf32, #tpu.memory_space<vmem>>, vector<1x128xf32>
    %c21_75 = arith.constant 21 : index
    %c0_76 = arith.constant 0 : index
    %99 = vector.load %arg15[%c21_75, %c0_76] : memref<32x128xf32, #tpu.memory_space<vmem>>, vector<1x128xf32>
    tpu.vector_store %arg15[%c21_75, %c0_76], %98 {strides = array<i32>} : memref<32x128xf32, #tpu.memory_space<vmem>>, vector<1x128xf32>,
    %c22 = arith.constant 22 : index
    %100 = memref.load %arg2[%c22] : memref<32xi32, #tpu.memory_space<smem>>
    %101 = arith.index_cast %100 : i32 to index
    %c0_77 = arith.constant 0 : index
    %102 = vector.load %arg12[%101, %c0_77] : memref<16x128xf32, #tpu.memory_space<vmem>>, vector<1x128xf32>
    %c22_78 = arith.constant 22 : index
    %c0_79 = arith.constant 0 : index
    %103 = vector.load %arg15[%c22_78, %c0_79] : memref<32x128xf32, #tpu.memory_space<vmem>>, vector<1x128xf32>
    tpu.vector_store %arg15[%c22_78, %c0_79], %102 {strides = array<i32>} : memref<32x128xf32, #tpu.memory_space<vmem>>, vector<1x128xf32>,
    %c23 = arith.constant 23 : index
    %104 = memref.load %arg2[%c23] : memref<32xi32, #tpu.memory_space<smem>>
    %105 = arith.index_cast %104 : i32 to index
    %c0_80 = arith.constant 0 : index
    %106 = vector.load %arg12[%105, %c0_80] : memref<16x128xf32, #tpu.memory_space<vmem>>, vector<1x128xf32>
    %c23_81 = arith.constant 23 : index
    %c0_82 = arith.constant 0 : index
    %107 = vector.load %arg15[%c23_81, %c0_82] : memref<32x128xf32, #tpu.memory_space<vmem>>, vector<1x128xf32>
    tpu.vector_store %arg15[%c23_81, %c0_82], %106 {strides = array<i32>} : memref<32x128xf32, #tpu.memory_space<vmem>>, vector<1x128xf32>,
    %c24 = arith.constant 24 : index
    %108 = memref.load %arg2[%c24] : memref<32xi32, #tpu.memory_space<smem>>
    %109 = arith.index_cast %108 : i32 to index
    %c0_83 = arith.constant 0 : index
    %110 = vector.load %arg12[%109, %c0_83] : memref<16x128xf32, #tpu.memory_space<vmem>>, vector<1x128xf32>
    %c24_84 = arith.constant 24 : index
    %c0_85 = arith.constant 0 : index
    %111 = vector.load %arg15[%c24_84, %c0_85] : memref<32x128xf32, #tpu.memory_space<vmem>>, vector<1x128xf32>
    tpu.vector_store %arg15[%c24_84, %c0_85], %110 {strides = array<i32>} : memref<32x128xf32, #tpu.memory_space<vmem>>, vector<1x128xf32>,
    %c25 = arith.constant 25 : index
    %112 = memref.load %arg2[%c25] : memref<32xi32, #tpu.memory_space<smem>>
    %113 = arith.index_cast %112 : i32 to index
    %c0_86 = arith.constant 0 : index
    %114 = vector.load %arg12[%113, %c0_86] : memref<16x128xf32, #tpu.memory_space<vmem>>, vector<1x128xf32>
    %c25_87 = arith.constant 25 : index
    %c0_88 = arith.constant 0 : index
    %115 = vector.load %arg15[%c25_87, %c0_88] : memref<32x128xf32, #tpu.memory_space<vmem>>, vector<1x128xf32>
    tpu.vector_store %arg15[%c25_87, %c0_88], %114 {strides = array<i32>} : memref<32x128xf32, #tpu.memory_space<vmem>>, vector<1x128xf32>,
    %c26 = arith.constant 26 : index
    %116 = memref.load %arg2[%c26] : memref<32xi32, #tpu.memory_space<smem>>
    %117 = arith.index_cast %116 : i32 to index
    %c0_89 = arith.constant 0 : index
    %118 = vector.load %arg12[%117, %c0_89] : memref<16x128xf32, #tpu.memory_space<vmem>>, vector<1x128xf32>
    %c26_90 = arith.constant 26 : index
    %c0_91 = arith.constant 0 : index
    %119 = vector.load %arg15[%c26_90, %c0_91] : memref<32x128xf32, #tpu.memory_space<vmem>>, vector<1x128xf32>
    tpu.vector_store %arg15[%c26_90, %c0_91], %118 {strides = array<i32>} : memref<32x128xf32, #tpu.memory_space<vmem>>, vector<1x128xf32>,
    %c27 = arith.constant 27 : index
    %120 = memref.load %arg2[%c27] : memref<32xi32, #tpu.memory_space<smem>>
    %121 = arith.index_cast %120 : i32 to index
    %c0_92 = arith.constant 0 : index
    %122 = vector.load %arg12[%121, %c0_92] : memref<16x128xf32, #tpu.memory_space<vmem>>, vector<1x128xf32>
    %c27_93 = arith.constant 27 : index
    %c0_94 = arith.constant 0 : index
    %123 = vector.load %arg15[%c27_93, %c0_94] : memref<32x128xf32, #tpu.memory_space<vmem>>, vector<1x128xf32>
    tpu.vector_store %arg15[%c27_93, %c0_94], %122 {strides = array<i32>} : memref<32x128xf32, #tpu.memory_space<vmem>>, vector<1x128xf32>,
    %c28 = arith.constant 28 : index
    %124 = memref.load %arg2[%c28] : memref<32xi32, #tpu.memory_space<smem>>
    %125 = arith.index_cast %124 : i32 to index
    %c0_95 = arith.constant 0 : index
    %126 = vector.load %arg12[%125, %c0_95] : memref<16x128xf32, #tpu.memory_space<vmem>>, vector<1x128xf32>
    %c28_96 = arith.constant 28 : index
    %c0_97 = arith.constant 0 : index
    %127 = vector.load %arg15[%c28_96, %c0_97] : memref<32x128xf32, #tpu.memory_space<vmem>>, vector<1x128xf32>
    tpu.vector_store %arg15[%c28_96, %c0_97], %126 {strides = array<i32>} : memref<32x128xf32, #tpu.memory_space<vmem>>, vector<1x128xf32>,
    %c29 = arith.constant 29 : index
    %128 = memref.load %arg2[%c29] : memref<32xi32, #tpu.memory_space<smem>>
    %129 = arith.index_cast %128 : i32 to index
    %c0_98 = arith.constant 0 : index
    %130 = vector.load %arg12[%129, %c0_98] : memref<16x128xf32, #tpu.memory_space<vmem>>, vector<1x128xf32>
    %c29_99 = arith.constant 29 : index
    %c0_100 = arith.constant 0 : index
    %131 = vector.load %arg15[%c29_99, %c0_100] : memref<32x128xf32, #tpu.memory_space<vmem>>, vector<1x128xf32>
    tpu.vector_store %arg15[%c29_99, %c0_100], %130 {strides = array<i32>} : memref<32x128xf32, #tpu.memory_space<vmem>>, vector<1x128xf32>,
    %c30 = arith.constant 30 : index
    %132 = memref.load %arg2[%c30] : memref<32xi32, #tpu.memory_space<smem>>
    %133 = arith.index_cast %132 : i32 to index
    %c0_101 = arith.constant 0 : index
    %134 = vector.load %arg12[%133, %c0_101] : memref<16x128xf32, #tpu.memory_space<vmem>>, vector<1x128xf32>
    %c30_102 = arith.constant 30 : index
    %c0_103 = arith.constant 0 : index
    %135 = vector.load %arg15[%c30_102, %c0_103] : memref<32x128xf32, #tpu.memory_space<vmem>>, vector<1x128xf32>
    tpu.vector_store %arg15[%c30_102, %c0_103], %134 {strides = array<i32>} : memref<32x128xf32, #tpu.memory_space<vmem>>, vector<1x128xf32>,
    %c31 = arith.constant 31 : index
    %136 = memref.load %arg2[%c31] : memref<32xi32, #tpu.memory_space<smem>>
    %137 = arith.index_cast %136 : i32 to index
    %c0_104 = arith.constant 0 : index
    %138 = vector.load %arg12[%137, %c0_104] : memref<16x128xf32, #tpu.memory_space<vmem>>, vector<1x128xf32>
    %c31_105 = arith.constant 31 : index
    %c0_106 = arith.constant 0 : index
    %139 = vector.load %arg15[%c31_105, %c0_106] : memref<32x128xf32, #tpu.memory_space<vmem>>, vector<1x128xf32>
    tpu.vector_store %arg15[%c31_105, %c0_106], %138 {strides = array<i32>} : memref<32x128xf32, #tpu.memory_space<vmem>>, vector<1x128xf32>,
    %c0_107 = arith.constant 0 : index
    %c0_108 = arith.constant 0 : index
    %140 = vector.load %arg15[%c0_107, %c0_108] : memref<32x128xf32, #tpu.memory_space<vmem>>, vector<32x128xf32>
    %c0_109 = arith.constant 0 : index
    %c0_110 = arith.constant 0 : index
    %141 = vector.load %arg14[%c0_109, %c0_110] : memref<32x128xf32, #tpu.memory_space<vmem>>, vector<32x128xf32>
    %142 = arith.addf %140, %141 : vector<32x128xf32>
    %cst_111 = arith.constant 0.000000e+00 : f32
    %143 = vector.broadcast %cst_111 : f32 to vector<32x128xf32>
    %144 = arith.maximumf %142, %143 : vector<32x128xf32>
    %c0_112 = arith.constant 0 : index
    %c0_113 = arith.constant 0 : index
    %145 = vector.load %arg14[%c0_112, %c0_113] : memref<32x128xf32, #tpu.memory_space<vmem>>, vector<32x128xf32>
    tpu.vector_store %arg14[%c0_112, %c0_113], %144 {strides = array<i32>} : memref<32x128xf32, #tpu.memory_space<vmem>>, vector<32x128xf32>,
    %146 = arith.index_cast %arg0 : i32 to index
    %147 = memref.load %arg5[%146] : memref<2xf32, #tpu.memory_space<smem>>
    %cst_114 = arith.constant 1.000000e+00 : f32
    %148 = arith.addf %cst_114, %147 : f32
    %c0_115 = arith.constant 0 : index
    %c0_116 = arith.constant 0 : index
    %149 = vector.load %arg12[%c0_115, %c0_116] : memref<16x128xf32, #tpu.memory_space<vmem>>, vector<16x128xf32>
    %150 = vector.broadcast %148 : f32 to vector<16x128xf32>
    %151 = arith.mulf %150, %149 : vector<16x128xf32>
    %c0_117 = arith.constant 0 : index
    %c0_118 = arith.constant 0 : index
    %152 = vector.load %arg13[%c0_117, %c0_118] : memref<16x128xf32, #tpu.memory_space<vmem>>, vector<16x128xf32>
    tpu.vector_store %arg13[%c0_117, %c0_118], %151 {strides = array<i32>} : memref<16x128xf32, #tpu.memory_space<vmem>>, vector<16x128xf32>,
    %c0_119 = arith.constant 0 : index
    %153 = memref.load %arg1[%c0_119] : memref<17xi32, #tpu.memory_space<smem>>
    %c1_120 = arith.constant 1 : index
    %154 = memref.load %arg1[%c1_120] : memref<17xi32, #tpu.memory_space<smem>>
    %c0_i32_121 = arith.constant 0 : i32
    %155 = arith.subi %154, %153 : i32
    %156 = arith.addi %153, %155 : i32
    %c1_i32 = arith.constant 1 : i32
    scf.for %arg16 = %153 to %156 step %c1_i32  : i32 {
      %c0_203 = arith.constant 0 : index
      %c0_204 = arith.constant 0 : index
      %240 = vector.load %arg13[%c0_203, %c0_204] : memref<16x128xf32, #tpu.memory_space<vmem>>, vector<1x128xf32>
      %241 = arith.index_cast %arg16 : i32 to index
      %c0_205 = arith.constant 0 : index
      %242 = vector.load %arg14[%241, %c0_205] : memref<32x128xf32, #tpu.memory_space<vmem>>, vector<1x128xf32>
      %243 = arith.addf %240, %242 : vector<1x128xf32>
      %c0_206 = arith.constant 0 : index
      %c0_207 = arith.constant 0 : index
      %244 = vector.load %arg13[%c0_206, %c0_207] : memref<16x128xf32, #tpu.memory_space<vmem>>, vector<1x128xf32>
      tpu.vector_store %arg13[%c0_206, %c0_207], %243 {strides = array<i32>} : memref<16x128xf32, #tpu.memory_space<vmem>>, vector<1x128xf32>,
    }
    %c1_122 = arith.constant 1 : index
    %157 = memref.load %arg1[%c1_122] : memref<17xi32, #tpu.memory_space<smem>>
    %c2_123 = arith.constant 2 : index
    %158 = memref.load %arg1[%c2_123] : memref<17xi32, #tpu.memory_space<smem>>
    %c0_i32_124 = arith.constant 0 : i32
    %159 = arith.subi %158, %157 : i32
    %160 = arith.addi %157, %159 : i32
    %c1_i32_125 = arith.constant 1 : i32
    scf.for %arg16 = %157 to %160 step %c1_i32_125  : i32 {
      %c1_203 = arith.constant 1 : index
      %c0_204 = arith.constant 0 : index
      %240 = vector.load %arg13[%c1_203, %c0_204] : memref<16x128xf32, #tpu.memory_space<vmem>>, vector<1x128xf32>
      %241 = arith.index_cast %arg16 : i32 to index
      %c0_205 = arith.constant 0 : index
      %242 = vector.load %arg14[%241, %c0_205] : memref<32x128xf32, #tpu.memory_space<vmem>>, vector<1x128xf32>
      %243 = arith.addf %240, %242 : vector<1x128xf32>
      %c1_206 = arith.constant 1 : index
      %c0_207 = arith.constant 0 : index
      %244 = vector.load %arg13[%c1_206, %c0_207] : memref<16x128xf32, #tpu.memory_space<vmem>>, vector<1x128xf32>
      tpu.vector_store %arg13[%c1_206, %c0_207], %243 {strides = array<i32>} : memref<16x128xf32, #tpu.memory_space<vmem>>, vector<1x128xf32>,
    }
    %c2_126 = arith.constant 2 : index
    %161 = memref.load %arg1[%c2_126] : memref<17xi32, #tpu.memory_space<smem>>
    %c3_127 = arith.constant 3 : index
    %162 = memref.load %arg1[%c3_127] : memref<17xi32, #tpu.memory_space<smem>>
    %c0_i32_128 = arith.constant 0 : i32
    %163 = arith.subi %162, %161 : i32
    %164 = arith.addi %161, %163 : i32
    %c1_i32_129 = arith.constant 1 : i32
    scf.for %arg16 = %161 to %164 step %c1_i32_129  : i32 {
      %c2_203 = arith.constant 2 : index
      %c0_204 = arith.constant 0 : index
      %240 = vector.load %arg13[%c2_203, %c0_204] : memref<16x128xf32, #tpu.memory_space<vmem>>, vector<1x128xf32>
      %241 = arith.index_cast %arg16 : i32 to index
      %c0_205 = arith.constant 0 : index
      %242 = vector.load %arg14[%241, %c0_205] : memref<32x128xf32, #tpu.memory_space<vmem>>, vector<1x128xf32>
      %243 = arith.addf %240, %242 : vector<1x128xf32>
      %c2_206 = arith.constant 2 : index
      %c0_207 = arith.constant 0 : index
      %244 = vector.load %arg13[%c2_206, %c0_207] : memref<16x128xf32, #tpu.memory_space<vmem>>, vector<1x128xf32>
      tpu.vector_store %arg13[%c2_206, %c0_207], %243 {strides = array<i32>} : memref<16x128xf32, #tpu.memory_space<vmem>>, vector<1x128xf32>,
    }
    %c3_130 = arith.constant 3 : index
    %165 = memref.load %arg1[%c3_130] : memref<17xi32, #tpu.memory_space<smem>>
    %c4_131 = arith.constant 4 : index
    %166 = memref.load %arg1[%c4_131] : memref<17xi32, #tpu.memory_space<smem>>
    %c0_i32_132 = arith.constant 0 : i32
    %167 = arith.subi %166, %165 : i32
    %168 = arith.addi %165, %167 : i32
    %c1_i32_133 = arith.constant 1 : i32
    scf.for %arg16 = %165 to %168 step %c1_i32_133  : i32 {
      %c3_203 = arith.constant 3 : index
      %c0_204 = arith.constant 0 : index
      %240 = vector.load %arg13[%c3_203, %c0_204] : memref<16x128xf32, #tpu.memory_space<vmem>>, vector<1x128xf32>
      %241 = arith.index_cast %arg16 : i32 to index
      %c0_205 = arith.constant 0 : index
      %242 = vector.load %arg14[%241, %c0_205] : memref<32x128xf32, #tpu.memory_space<vmem>>, vector<1x128xf32>
      %243 = arith.addf %240, %242 : vector<1x128xf32>
      %c3_206 = arith.constant 3 : index
      %c0_207 = arith.constant 0 : index
      %244 = vector.load %arg13[%c3_206, %c0_207] : memref<16x128xf32, #tpu.memory_space<vmem>>, vector<1x128xf32>
      tpu.vector_store %arg13[%c3_206, %c0_207], %243 {strides = array<i32>} : memref<16x128xf32, #tpu.memory_space<vmem>>, vector<1x128xf32>,
    }
    %c4_134 = arith.constant 4 : index
    %169 = memref.load %arg1[%c4_134] : memref<17xi32, #tpu.memory_space<smem>>
    %c5_135 = arith.constant 5 : index
    %170 = memref.load %arg1[%c5_135] : memref<17xi32, #tpu.memory_space<smem>>
    %c0_i32_136 = arith.constant 0 : i32
    %171 = arith.subi %170, %169 : i32
    %172 = arith.addi %169, %171 : i32
    %c1_i32_137 = arith.constant 1 : i32
    scf.for %arg16 = %169 to %172 step %c1_i32_137  : i32 {
      %c4_203 = arith.constant 4 : index
      %c0_204 = arith.constant 0 : index
      %240 = vector.load %arg13[%c4_203, %c0_204] : memref<16x128xf32, #tpu.memory_space<vmem>>, vector<1x128xf32>
      %241 = arith.index_cast %arg16 : i32 to index
      %c0_205 = arith.constant 0 : index
      %242 = vector.load %arg14[%241, %c0_205] : memref<32x128xf32, #tpu.memory_space<vmem>>, vector<1x128xf32>
      %243 = arith.addf %240, %242 : vector<1x128xf32>
      %c4_206 = arith.constant 4 : index
      %c0_207 = arith.constant 0 : index
      %244 = vector.load %arg13[%c4_206, %c0_207] : memref<16x128xf32, #tpu.memory_space<vmem>>, vector<1x128xf32>
      tpu.vector_store %arg13[%c4_206, %c0_207], %243 {strides = array<i32>} : memref<16x128xf32, #tpu.memory_space<vmem>>, vector<1x128xf32>,
    }
    %c5_138 = arith.constant 5 : index
    %173 = memref.load %arg1[%c5_138] : memref<17xi32, #tpu.memory_space<smem>>
    %c6_139 = arith.constant 6 : index
    %174 = memref.load %arg1[%c6_139] : memref<17xi32, #tpu.memory_space<smem>>
    %c0_i32_140 = arith.constant 0 : i32
    %175 = arith.subi %174, %173 : i32
    %176 = arith.addi %173, %175 : i32
    %c1_i32_141 = arith.constant 1 : i32
    scf.for %arg16 = %173 to %176 step %c1_i32_141  : i32 {
      %c5_203 = arith.constant 5 : index
      %c0_204 = arith.constant 0 : index
      %240 = vector.load %arg13[%c5_203, %c0_204] : memref<16x128xf32, #tpu.memory_space<vmem>>, vector<1x128xf32>
      %241 = arith.index_cast %arg16 : i32 to index
      %c0_205 = arith.constant 0 : index
      %242 = vector.load %arg14[%241, %c0_205] : memref<32x128xf32, #tpu.memory_space<vmem>>, vector<1x128xf32>
      %243 = arith.addf %240, %242 : vector<1x128xf32>
      %c5_206 = arith.constant 5 : index
      %c0_207 = arith.constant 0 : index
      %244 = vector.load %arg13[%c5_206, %c0_207] : memref<16x128xf32, #tpu.memory_space<vmem>>, vector<1x128xf32>
      tpu.vector_store %arg13[%c5_206, %c0_207], %243 {strides = array<i32>} : memref<16x128xf32, #tpu.memory_space<vmem>>, vector<1x128xf32>,
    }
    %c6_142 = arith.constant 6 : index
    %177 = memref.load %arg1[%c6_142] : memref<17xi32, #tpu.memory_space<smem>>
    %c7_143 = arith.constant 7 : index
    %178 = memref.load %arg1[%c7_143] : memref<17xi32, #tpu.memory_space<smem>>
    %c0_i32_144 = arith.constant 0 : i32
    %179 = arith.subi %178, %177 : i32
    %180 = arith.addi %177, %179 : i32
    %c1_i32_145 = arith.constant 1 : i32
    scf.for %arg16 = %177 to %180 step %c1_i32_145  : i32 {
      %c6_203 = arith.constant 6 : index
      %c0_204 = arith.constant 0 : index
      %240 = vector.load %arg13[%c6_203, %c0_204] : memref<16x128xf32, #tpu.memory_space<vmem>>, vector<1x128xf32>
      %241 = arith.index_cast %arg16 : i32 to index
      %c0_205 = arith.constant 0 : index
      %242 = vector.load %arg14[%241, %c0_205] : memref<32x128xf32, #tpu.memory_space<vmem>>, vector<1x128xf32>
      %243 = arith.addf %240, %242 : vector<1x128xf32>
      %c6_206 = arith.constant 6 : index
      %c0_207 = arith.constant 0 : index
      %244 = vector.load %arg13[%c6_206, %c0_207] : memref<16x128xf32, #tpu.memory_space<vmem>>, vector<1x128xf32>
      tpu.vector_store %arg13[%c6_206, %c0_207], %243 {strides = array<i32>} : memref<16x128xf32, #tpu.memory_space<vmem>>, vector<1x128xf32>,
    }
    %c7_146 = arith.constant 7 : index
    %181 = memref.load %arg1[%c7_146] : memref<17xi32, #tpu.memory_space<smem>>
    %c8_147 = arith.constant 8 : index
    %182 = memref.load %arg1[%c8_147] : memref<17xi32, #tpu.memory_space<smem>>
    %c0_i32_148 = arith.constant 0 : i32
    %183 = arith.subi %182, %181 : i32
    %184 = arith.addi %181, %183 : i32
    %c1_i32_149 = arith.constant 1 : i32
    scf.for %arg16 = %181 to %184 step %c1_i32_149  : i32 {
      %c7_203 = arith.constant 7 : index
      %c0_204 = arith.constant 0 : index
      %240 = vector.load %arg13[%c7_203, %c0_204] : memref<16x128xf32, #tpu.memory_space<vmem>>, vector<1x128xf32>
      %241 = arith.index_cast %arg16 : i32 to index
      %c0_205 = arith.constant 0 : index
      %242 = vector.load %arg14[%241, %c0_205] : memref<32x128xf32, #tpu.memory_space<vmem>>, vector<1x128xf32>
      %243 = arith.addf %240, %242 : vector<1x128xf32>
      %c7_206 = arith.constant 7 : index
      %c0_207 = arith.constant 0 : index
      %244 = vector.load %arg13[%c7_206, %c0_207] : memref<16x128xf32, #tpu.memory_space<vmem>>, vector<1x128xf32>
      tpu.vector_store %arg13[%c7_206, %c0_207], %243 {strides = array<i32>} : memref<16x128xf32, #tpu.memory_space<vmem>>, vector<1x128xf32>,
    }
    %c8_150 = arith.constant 8 : index
    %185 = memref.load %arg1[%c8_150] : memref<17xi32, #tpu.memory_space<smem>>
    %c9_151 = arith.constant 9 : index
    %186 = memref.load %arg1[%c9_151] : memref<17xi32, #tpu.memory_space<smem>>
    %c0_i32_152 = arith.constant 0 : i32
    %187 = arith.subi %186, %185 : i32
    %188 = arith.addi %185, %187 : i32
    %c1_i32_153 = arith.constant 1 : i32
    scf.for %arg16 = %185 to %188 step %c1_i32_153  : i32 {
      %c8_203 = arith.constant 8 : index
      %c0_204 = arith.constant 0 : index
      %240 = vector.load %arg13[%c8_203, %c0_204] : memref<16x128xf32, #tpu.memory_space<vmem>>, vector<1x128xf32>
      %241 = arith.index_cast %arg16 : i32 to index
      %c0_205 = arith.constant 0 : index
      %242 = vector.load %arg14[%241, %c0_205] : memref<32x128xf32, #tpu.memory_space<vmem>>, vector<1x128xf32>
      %243 = arith.addf %240, %242 : vector<1x128xf32>
      %c8_206 = arith.constant 8 : index
      %c0_207 = arith.constant 0 : index
      %244 = vector.load %arg13[%c8_206, %c0_207] : memref<16x128xf32, #tpu.memory_space<vmem>>, vector<1x128xf32>
      tpu.vector_store %arg13[%c8_206, %c0_207], %243 {strides = array<i32>} : memref<16x128xf32, #tpu.memory_space<vmem>>, vector<1x128xf32>,
    }
    %c9_154 = arith.constant 9 : index
    %189 = memref.load %arg1[%c9_154] : memref<17xi32, #tpu.memory_space<smem>>
    %c10_155 = arith.constant 10 : index
    %190 = memref.load %arg1[%c10_155] : memref<17xi32, #tpu.memory_space<smem>>
    %c0_i32_156 = arith.constant 0 : i32
    %191 = arith.subi %190, %189 : i32
    %192 = arith.addi %189, %191 : i32
    %c1_i32_157 = arith.constant 1 : i32
    scf.for %arg16 = %189 to %192 step %c1_i32_157  : i32 {
      %c9_203 = arith.constant 9 : index
      %c0_204 = arith.constant 0 : index
      %240 = vector.load %arg13[%c9_203, %c0_204] : memref<16x128xf32, #tpu.memory_space<vmem>>, vector<1x128xf32>
      %241 = arith.index_cast %arg16 : i32 to index
      %c0_205 = arith.constant 0 : index
      %242 = vector.load %arg14[%241, %c0_205] : memref<32x128xf32, #tpu.memory_space<vmem>>, vector<1x128xf32>
      %243 = arith.addf %240, %242 : vector<1x128xf32>
      %c9_206 = arith.constant 9 : index
      %c0_207 = arith.constant 0 : index
      %244 = vector.load %arg13[%c9_206, %c0_207] : memref<16x128xf32, #tpu.memory_space<vmem>>, vector<1x128xf32>
      tpu.vector_store %arg13[%c9_206, %c0_207], %243 {strides = array<i32>} : memref<16x128xf32, #tpu.memory_space<vmem>>, vector<1x128xf32>,
    }
    %c10_158 = arith.constant 10 : index
    %193 = memref.load %arg1[%c10_158] : memref<17xi32, #tpu.memory_space<smem>>
    %c11_159 = arith.constant 11 : index
    %194 = memref.load %arg1[%c11_159] : memref<17xi32, #tpu.memory_space<smem>>
    %c0_i32_160 = arith.constant 0 : i32
    %195 = arith.subi %194, %193 : i32
    %196 = arith.addi %193, %195 : i32
    %c1_i32_161 = arith.constant 1 : i32
    scf.for %arg16 = %193 to %196 step %c1_i32_161  : i32 {
      %c10_203 = arith.constant 10 : index
      %c0_204 = arith.constant 0 : index
      %240 = vector.load %arg13[%c10_203, %c0_204] : memref<16x128xf32, #tpu.memory_space<vmem>>, vector<1x128xf32>
      %241 = arith.index_cast %arg16 : i32 to index
      %c0_205 = arith.constant 0 : index
      %242 = vector.load %arg14[%241, %c0_205] : memref<32x128xf32, #tpu.memory_space<vmem>>, vector<1x128xf32>
      %243 = arith.addf %240, %242 : vector<1x128xf32>
      %c10_206 = arith.constant 10 : index
      %c0_207 = arith.constant 0 : index
      %244 = vector.load %arg13[%c10_206, %c0_207] : memref<16x128xf32, #tpu.memory_space<vmem>>, vector<1x128xf32>
      tpu.vector_store %arg13[%c10_206, %c0_207], %243 {strides = array<i32>} : memref<16x128xf32, #tpu.memory_space<vmem>>, vector<1x128xf32>,
    }
    %c11_162 = arith.constant 11 : index
    %197 = memref.load %arg1[%c11_162] : memref<17xi32, #tpu.memory_space<smem>>
    %c12_163 = arith.constant 12 : index
    %198 = memref.load %arg1[%c12_163] : memref<17xi32, #tpu.memory_space<smem>>
    %c0_i32_164 = arith.constant 0 : i32
    %199 = arith.subi %198, %197 : i32
    %200 = arith.addi %197, %199 : i32
    %c1_i32_165 = arith.constant 1 : i32
    scf.for %arg16 = %197 to %200 step %c1_i32_165  : i32 {
      %c11_203 = arith.constant 11 : index
      %c0_204 = arith.constant 0 : index
      %240 = vector.load %arg13[%c11_203, %c0_204] : memref<16x128xf32, #tpu.memory_space<vmem>>, vector<1x128xf32>
      %241 = arith.index_cast %arg16 : i32 to index
      %c0_205 = arith.constant 0 : index
      %242 = vector.load %arg14[%241, %c0_205] : memref<32x128xf32, #tpu.memory_space<vmem>>, vector<1x128xf32>
      %243 = arith.addf %240, %242 : vector<1x128xf32>
      %c11_206 = arith.constant 11 : index
      %c0_207 = arith.constant 0 : index
      %244 = vector.load %arg13[%c11_206, %c0_207] : memref<16x128xf32, #tpu.memory_space<vmem>>, vector<1x128xf32>
      tpu.vector_store %arg13[%c11_206, %c0_207], %243 {strides = array<i32>} : memref<16x128xf32, #tpu.memory_space<vmem>>, vector<1x128xf32>,
    }
    %c12_166 = arith.constant 12 : index
    %201 = memref.load %arg1[%c12_166] : memref<17xi32, #tpu.memory_space<smem>>
    %c13_167 = arith.constant 13 : index
    %202 = memref.load %arg1[%c13_167] : memref<17xi32, #tpu.memory_space<smem>>
    %c0_i32_168 = arith.constant 0 : i32
    %203 = arith.subi %202, %201 : i32
    %204 = arith.addi %201, %203 : i32
    %c1_i32_169 = arith.constant 1 : i32
    scf.for %arg16 = %201 to %204 step %c1_i32_169  : i32 {
      %c12_203 = arith.constant 12 : index
      %c0_204 = arith.constant 0 : index
      %240 = vector.load %arg13[%c12_203, %c0_204] : memref<16x128xf32, #tpu.memory_space<vmem>>, vector<1x128xf32>
      %241 = arith.index_cast %arg16 : i32 to index
      %c0_205 = arith.constant 0 : index
      %242 = vector.load %arg14[%241, %c0_205] : memref<32x128xf32, #tpu.memory_space<vmem>>, vector<1x128xf32>
      %243 = arith.addf %240, %242 : vector<1x128xf32>
      %c12_206 = arith.constant 12 : index
      %c0_207 = arith.constant 0 : index
      %244 = vector.load %arg13[%c12_206, %c0_207] : memref<16x128xf32, #tpu.memory_space<vmem>>, vector<1x128xf32>
      tpu.vector_store %arg13[%c12_206, %c0_207], %243 {strides = array<i32>} : memref<16x128xf32, #tpu.memory_space<vmem>>, vector<1x128xf32>,
    }
    %c13_170 = arith.constant 13 : index
    %205 = memref.load %arg1[%c13_170] : memref<17xi32, #tpu.memory_space<smem>>
    %c14_171 = arith.constant 14 : index
    %206 = memref.load %arg1[%c14_171] : memref<17xi32, #tpu.memory_space<smem>>
    %c0_i32_172 = arith.constant 0 : i32
    %207 = arith.subi %206, %205 : i32
    %208 = arith.addi %205, %207 : i32
    %c1_i32_173 = arith.constant 1 : i32
    scf.for %arg16 = %205 to %208 step %c1_i32_173  : i32 {
      %c13_203 = arith.constant 13 : index
      %c0_204 = arith.constant 0 : index
      %240 = vector.load %arg13[%c13_203, %c0_204] : memref<16x128xf32, #tpu.memory_space<vmem>>, vector<1x128xf32>
      %241 = arith.index_cast %arg16 : i32 to index
      %c0_205 = arith.constant 0 : index
      %242 = vector.load %arg14[%241, %c0_205] : memref<32x128xf32, #tpu.memory_space<vmem>>, vector<1x128xf32>
      %243 = arith.addf %240, %242 : vector<1x128xf32>
      %c13_206 = arith.constant 13 : index
      %c0_207 = arith.constant 0 : index
      %244 = vector.load %arg13[%c13_206, %c0_207] : memref<16x128xf32, #tpu.memory_space<vmem>>, vector<1x128xf32>
      tpu.vector_store %arg13[%c13_206, %c0_207], %243 {strides = array<i32>} : memref<16x128xf32, #tpu.memory_space<vmem>>, vector<1x128xf32>,
    }
    %c14_174 = arith.constant 14 : index
    %209 = memref.load %arg1[%c14_174] : memref<17xi32, #tpu.memory_space<smem>>
    %c15_175 = arith.constant 15 : index
    %210 = memref.load %arg1[%c15_175] : memref<17xi32, #tpu.memory_space<smem>>
    %c0_i32_176 = arith.constant 0 : i32
    %211 = arith.subi %210, %209 : i32
    %212 = arith.addi %209, %211 : i32
    %c1_i32_177 = arith.constant 1 : i32
    scf.for %arg16 = %209 to %212 step %c1_i32_177  : i32 {
      %c14_203 = arith.constant 14 : index
      %c0_204 = arith.constant 0 : index
      %240 = vector.load %arg13[%c14_203, %c0_204] : memref<16x128xf32, #tpu.memory_space<vmem>>, vector<1x128xf32>
      %241 = arith.index_cast %arg16 : i32 to index
      %c0_205 = arith.constant 0 : index
      %242 = vector.load %arg14[%241, %c0_205] : memref<32x128xf32, #tpu.memory_space<vmem>>, vector<1x128xf32>
      %243 = arith.addf %240, %242 : vector<1x128xf32>
      %c14_206 = arith.constant 14 : index
      %c0_207 = arith.constant 0 : index
      %244 = vector.load %arg13[%c14_206, %c0_207] : memref<16x128xf32, #tpu.memory_space<vmem>>, vector<1x128xf32>
      tpu.vector_store %arg13[%c14_206, %c0_207], %243 {strides = array<i32>} : memref<16x128xf32, #tpu.memory_space<vmem>>, vector<1x128xf32>,
    }
    %c15_178 = arith.constant 15 : index
    %213 = memref.load %arg1[%c15_178] : memref<17xi32, #tpu.memory_space<smem>>
    %c16_179 = arith.constant 16 : index
    %214 = memref.load %arg1[%c16_179] : memref<17xi32, #tpu.memory_space<smem>>
    %c0_i32_180 = arith.constant 0 : i32
    %215 = arith.subi %214, %213 : i32
    %216 = arith.addi %213, %215 : i32
    %c1_i32_181 = arith.constant 1 : i32
    scf.for %arg16 = %213 to %216 step %c1_i32_181  : i32 {
      %c15_203 = arith.constant 15 : index
      %c0_204 = arith.constant 0 : index
      %240 = vector.load %arg13[%c15_203, %c0_204] : memref<16x128xf32, #tpu.memory_space<vmem>>, vector<1x128xf32>
      %241 = arith.index_cast %arg16 : i32 to index
      %c0_205 = arith.constant 0 : index
      %242 = vector.load %arg14[%241, %c0_205] : memref<32x128xf32, #tpu.memory_space<vmem>>, vector<1x128xf32>
      %243 = arith.addf %240, %242 : vector<1x128xf32>
      %c15_206 = arith.constant 15 : index
      %c0_207 = arith.constant 0 : index
      %244 = vector.load %arg13[%c15_206, %c0_207] : memref<16x128xf32, #tpu.memory_space<vmem>>, vector<1x128xf32>
      tpu.vector_store %arg13[%c15_206, %c0_207], %243 {strides = array<i32>} : memref<16x128xf32, #tpu.memory_space<vmem>>, vector<1x128xf32>,
    }
    %c0_182 = arith.constant 0 : index
    %c0_183 = arith.constant 0 : index
    %217 = vector.load %arg13[%c0_182, %c0_183] : memref<16x128xf32, #tpu.memory_space<vmem>>, vector<16x128xf32>
    %c0_184 = arith.constant 0 : index
    %c0_185 = arith.constant 0 : index
    %c0_186 = arith.constant 0 : index
    %218 = vector.load %arg8[%c0_184, %c0_185, %c0_186] : memref<1x128x128xf32, #tpu.memory_space<vmem>>, vector<1x128x128xf32>
    %219 = vector.shape_cast %218 : vector<1x128x128xf32> to vector<128x128xf32>
    %cst_187 = arith.constant dense<0.000000e+00> : vector<16x128xf32>
    %220 = tpu.matmul %217, %219, %cst_187 {dimension_numbers = #tpu.dot_dimension_numbers<[1], [0], [0], [1], [0, 0, 1, 1], [], []>} : vector<16x128xf32>, vector<128x128xf32>, vector<16x128xf32> -> vector<16x128xf32>
    %c0_188 = arith.constant 0 : index
    %c0_189 = arith.constant 0 : index
    %c0_190 = arith.constant 0 : index
    %221 = vector.load %arg9[%c0_188, %c0_189, %c0_190] : memref<1x1x128xf32, #tpu.memory_space<vmem>>, vector<1x1x128xf32>
    %222 = vector.shape_cast %221 : vector<1x1x128xf32> to vector<1x128xf32>
    %223 = vector.broadcast %222 : vector<1x128xf32> to vector<16x128xf32>
    %224 = arith.addf %220, %223 : vector<16x128xf32>
    %cst_191 = arith.constant 0.000000e+00 : f32
    %225 = vector.broadcast %cst_191 : f32 to vector<16x128xf32>
    %226 = arith.maximumf %224, %225 : vector<16x128xf32>
    %c0_192 = arith.constant 0 : index
    %c0_193 = arith.constant 0 : index
    %c0_194 = arith.constant 0 : index
    %227 = vector.load %arg10[%c0_192, %c0_193, %c0_194] : memref<1x128x128xf32, #tpu.memory_space<vmem>>, vector<1x128x128xf32>
    %228 = vector.shape_cast %227 : vector<1x128x128xf32> to vector<128x128xf32>
    %cst_195 = arith.constant dense<0.000000e+00> : vector<16x128xf32>
    %229 = tpu.matmul %226, %228, %cst_195 {dimension_numbers = #tpu.dot_dimension_numbers<[1], [0], [0], [1], [0, 0, 1, 1], [], []>} : vector<16x128xf32>, vector<128x128xf32>, vector<16x128xf32> -> vector<16x128xf32>
    %c0_196 = arith.constant 0 : index
    %c0_197 = arith.constant 0 : index
    %c0_198 = arith.constant 0 : index
    %230 = vector.load %arg11[%c0_196, %c0_197, %c0_198] : memref<1x1x128xf32, #tpu.memory_space<vmem>>, vector<1x1x128xf32>
    %231 = vector.shape_cast %230 : vector<1x1x128xf32> to vector<1x128xf32>
    %232 = vector.broadcast %231 : vector<1x128xf32> to vector<16x128xf32>
    %233 = arith.addf %229, %232 : vector<16x128xf32>
    %c1_i32_199 = arith.constant 1 : i32
    %234 = arith.cmpi ne, %arg0, %c1_i32_199 : i32
    %235 = arith.extui %234 : i1 to i32
    %c0_i32_200 = arith.constant 0 : i32
    %236 = arith.cmpi ne, %235, %c0_i32_200 : i32
    scf.if %236 {
      %cst_203 = arith.constant 0.000000e+00 : f32
      %240 = vector.broadcast %cst_203 : f32 to vector<16x128xf32>
      %241 = arith.maximumf %233, %240 : vector<16x128xf32>
      %c0_204 = arith.constant 0 : index
      %c0_205 = arith.constant 0 : index
      %242 = vector.load %arg12[%c0_204, %c0_205] : memref<16x128xf32, #tpu.memory_space<vmem>>, vector<16x128xf32>
      tpu.vector_store %arg12[%c0_204, %c0_205], %241 {strides = array<i32>} : memref<16x128xf32, #tpu.memory_space<vmem>>, vector<16x128xf32>,
    } else {
    }
    %c1_i32_201 = arith.constant 1 : i32
    %237 = arith.cmpi eq, %arg0, %c1_i32_201 : i32
    %238 = arith.extui %237 : i1 to i32
    %c0_i32_202 = arith.constant 0 : i32
    %239 = arith.cmpi ne, %238, %c0_i32_202 : i32
    scf.if %239 {
      %c0_203 = arith.constant 0 : index
      %c0_204 = arith.constant 0 : index
      %240 = vector.load %arg12[%c0_203, %c0_204] : memref<16x128xf32, #tpu.memory_space<vmem>>, vector<16x128xf32>
      tpu.vector_store %arg12[%c0_203, %c0_204], %233 {strides = array<i32>} : memref<16x128xf32, #tpu.memory_space<vmem>>, vector<16x128xf32>,
    } else {
    }
    return
  }
  func.func @transform_0(%arg0: i32, %arg1: memref<17xi32, #tpu.memory_space<smem>>, %arg2: memref<32xi32, #tpu.memory_space<smem>>) -> (i32, i32) {
    %c0_i32 = arith.constant 0 : i32
    %c0_i32_0 = arith.constant 0 : i32
    %c0_i32_1 = arith.constant 0 : i32
    return %c0_i32, %c0_i32_0 : i32, i32
  }
  func.func @transform_1(%arg0: i32, %arg1: memref<17xi32, #tpu.memory_space<smem>>, %arg2: memref<32xi32, #tpu.memory_space<smem>>) -> (i32, i32) {
    %c0_i32 = arith.constant 0 : i32
    %c0_i32_0 = arith.constant 0 : i32
    %c0_i32_1 = arith.constant 0 : i32
    return %c0_i32, %c0_i32_0 : i32, i32
  }
  func.func @transform_2(%arg0: i32, %arg1: memref<17xi32, #tpu.memory_space<smem>>, %arg2: memref<32xi32, #tpu.memory_space<smem>>) -> i32 {
    %c0_i32 = arith.constant 0 : i32
    %c0_i32_0 = arith.constant 0 : i32
    return %c0_i32 : i32
  }
  func.func @transform_3(%arg0: i32, %arg1: memref<17xi32, #tpu.memory_space<smem>>, %arg2: memref<32xi32, #tpu.memory_space<smem>>) -> (i32, i32, i32) {
    %c0_i32 = arith.constant 0 : i32
    %c0_i32_0 = arith.constant 0 : i32
    %c0_i32_1 = arith.constant 0 : i32
    return %arg0, %c0_i32, %c0_i32_0 : i32, i32, i32
  }
  func.func @transform_4(%arg0: i32, %arg1: memref<17xi32, #tpu.memory_space<smem>>, %arg2: memref<32xi32, #tpu.memory_space<smem>>) -> (i32, i32, i32) {
    %c0_i32 = arith.constant 0 : i32
    %c0_i32_0 = arith.constant 0 : i32
    %c0_i32_1 = arith.constant 0 : i32
    return %arg0, %c0_i32, %c0_i32_0 : i32, i32, i32
  }
  func.func @transform_5(%arg0: i32, %arg1: memref<17xi32, #tpu.memory_space<smem>>, %arg2: memref<32xi32, #tpu.memory_space<smem>>) -> (i32, i32, i32) {
    %c0_i32 = arith.constant 0 : i32
    %c0_i32_0 = arith.constant 0 : i32
    %c0_i32_1 = arith.constant 0 : i32
    return %arg0, %c0_i32, %c0_i32_0 : i32, i32, i32
  }
  func.func @transform_6(%arg0: i32, %arg1: memref<17xi32, #tpu.memory_space<smem>>, %arg2: memref<32xi32, #tpu.memory_space<smem>>) -> (i32, i32, i32) {
    %c0_i32 = arith.constant 0 : i32
    %c0_i32_0 = arith.constant 0 : i32
    %c0_i32_1 = arith.constant 0 : i32
    return %arg0, %c0_i32, %c0_i32_0 : i32, i32, i32
  }
  func.func @transform_7(%arg0: i32, %arg1: memref<17xi32, #tpu.memory_space<smem>>, %arg2: memref<32xi32, #tpu.memory_space<smem>>) -> (i32, i32, i32) {
    %c0_i32 = arith.constant 0 : i32
    %c0_i32_0 = arith.constant 0 : i32
    %c0_i32_1 = arith.constant 0 : i32
    return %arg0, %c0_i32, %c0_i32_0 : i32, i32, i32
  }
  func.func @transform_8(%arg0: i32, %arg1: memref<17xi32, #tpu.memory_space<smem>>, %arg2: memref<32xi32, #tpu.memory_space<smem>>) -> (i32, i32, i32) {
    %c0_i32 = arith.constant 0 : i32
    %c0_i32_0 = arith.constant 0 : i32
    %c0_i32_1 = arith.constant 0 : i32
    return %arg0, %c0_i32, %c0_i32_0 : i32, i32, i32
  }
  func.func @transform_9(%arg0: i32, %arg1: memref<17xi32, #tpu.memory_space<smem>>, %arg2: memref<32xi32, #tpu.memory_space<smem>>) -> (i32, i32) {
    %c0_i32 = arith.constant 0 : i32
    %c0_i32_0 = arith.constant 0 : i32
    %c0_i32_1 = arith.constant 0 : i32
    return %c0_i32, %c0_i32_0 : i32, i32
  }
}

</mosaic_0001>

<llo_original>
// kernel: tpu_custom_call.1
$region0: #{tpu_custom_call.1}
  #allocation0 [shape = 'u32[]', space=smem, size = 0x4, offset = 0x4, fixed_abs, tag = 'smem constant byte address 0x4 - core index']
  #allocation1 [shape = 'u32[72,128]{1,0:T(1,128)}', space=vmem, size = 0x9000, scoped, tag = 'internal scratch']
  #allocation2 [shape = 'f32[16,128]{1,0:T(8,128)}', space=vmem, size = 0x2000, scoped, tag = 'scratch operand']
  #allocation3 [shape = 'f32[32,128]{1,0:T(8,128)}', space=vmem, size = 0x4000, scoped, tag = 'scratch operand']
  #allocation4 [shape = 'f32[32,128]{1,0:T(8,128)}', space=vmem, size = 0x4000, scoped, tag = 'scratch operand']
  #allocation5 [shape = 's32[1]{0}', space=sflag, size = 0x4, scoped, tag = 'scoped memory for tpu_custom_call.1']
  #allocation6 [shape = 'u8[512]{0}', space=smem, size = 0x200, scoped, tag = 'prefetched SMEM operand 0']
  #allocation7 [shape = 'u8[512]{0}', space=smem, size = 0x200, scoped, tag = 'prefetched SMEM operand 1']
  %s0 = inlined_call_operand.vmem [shape: s32[17], index: 0, kind: input, shape index: {}]
  %s1 = inlined_call_operand.vmem [shape: s32[32], index: 1, kind: input, shape index: {}]
  %s2 = inlined_call_operand.vmem [shape: f32[16,128], index: 2, kind: input, shape index: {}]
  %s3 = inlined_call_operand.vmem [shape: f32[32,8], index: 3, kind: input, shape index: {}]
  %s4 = inlined_call_operand.vmem [shape: f32[2], index: 4, kind: input, shape index: {}]
  %s5 = inlined_call_operand.vmem [shape: f32[2,8,128], index: 5, kind: input, shape index: {}]
  %s6 = inlined_call_operand.vmem [shape: f32[2,1,128], index: 6, kind: input, shape index: {}]
  %s7 = inlined_call_operand.hbm [shape: f32[2,128,128], index: 7, kind: input, shape index: {}]
  %s8 = inlined_call_operand.vmem [shape: f32[2,1,128], index: 8, kind: input, shape index: {}]
  %s9 = inlined_call_operand.hbm [shape: f32[2,128,128], index: 9, kind: input, shape index: {}]
  %s10 = inlined_call_operand.vmem [shape: f32[2,1,128], index: 10, kind: input, shape index: {}]
  %s11 = inlined_call_operand.hbm [shape: f32[16,128], index: 11, kind: output, shape index: {}]
  %s12 = sld [smem:[#allocation0]]
  $region205: #{tpu_custom_call.1} parent=0
    _
  %s14 = ssub.s32 1, %s12
  %s15 = scalar_select 0, %s14, %s12
  %s17 = sshll.u32 %s0, 4
  %s18 = int_to_ptr.vmem [resolvable:$true] %s17
  %20 = dma.vmem_to_smem %s18, 16, [#allocation6], [#allocation5]
  %s22 = sshll.u32 %s1, 4
  %s23 = int_to_ptr.vmem [resolvable:$true] %s22
  %25 = dma.vmem_to_smem %s23, 16, [#allocation7], [#allocation5]
  %27 = dma.done [#allocation5], 32
  %28 = sfence
  $region1: #{tpu_custom_call.1} parent=0
    #allocation8 [shape = 'u8[512]{0}', space=smem, size = 0x200, scoped, tag = 'input window, operand 4, single buffered']
    #allocation9 [shape = 's32[2]{0}', space=sflag, size = 0x8, scoped, tag = 'scoped memory for tpu_custom_call.1']
    #allocation10 [shape = 's32[2]{0}', space=sflag, size = 0x8, scoped, tag = 'scoped memory for tpu_custom_call.1']
    #allocation11 [shape = 's32[2]{0}', space=sflag, size = 0x8, scoped, tag = 'scoped memory for tpu_custom_call.1']
    #allocation12 [shape = 'u8[131072]{0}', space=vmem, size = 0x20000, scoped, tag = 'input window, operand 7']
    #allocation13 [shape = 'u8[131072]{0}', space=vmem, size = 0x20000, scoped, tag = 'input window, operand 9']
    #allocation14 [shape = 's32[2]{0}', space=sflag, size = 0x8, scoped, tag = 'scoped memory for tpu_custom_call.1']
    #allocation15 [shape = 'u8[8192]{0}', space=vmem, size = 0x2000, scoped, tag = 'output window, operand 0, single buffered']
    %29 = vsyncpa [#allocation11], 0
    %30 = vsyncpa [#allocation9], 0
    %s31 = scalar_lea.sflag [#allocation9], 1
    %32 = vsyncpa %s31, 0
    %33 = vsyncpa [#allocation14], 0
    %s34 = scalar_lea.sflag [#allocation14], 1
    %35 = vsyncpa %s34, 0
    %36 = vsyncpa [#allocation10], 0
    loop: start=0, step=1, limit=4
    $region2: #{tpu_custom_call.1} parent=1 // loop_pre_header
      _
    $region3: #{tpu_custom_call.1} parent=1 // loop_header
      %s38 = sphi 0, %s42
      %p39 = scmp.ge.s32.totalorder %s38, 4
      %s46 = sphi 0, %s46
      %s48 = sphi 0, %s46
      %s49 = sphi 0, %s48
      %s63 = sphi 0, %s49
      %s67 = sphi 0, %s67
      %s69 = sphi 0, %s67
      %s70 = sphi 0, %s69
      %s84 = sphi 0, %s70
      %s88 = sphi 0, %s88
      %s90 = sphi 0, %s88
      %s91 = sphi 0, %s90
      %s105 = sphi 0, %s91
      %s111 = sphi 0, %s113
      %s114 = sphi 0, %s111
      %s115 = sphi 0, %s114
      %s131 = sphi 0, %s115
      %s137 = sphi 0, %s139
      %s140 = sphi 0, %s137
      %s141 = sphi 0, %s140
      %s157 = sphi 0, %s141
      %s163 = sphi 0, %s165
      %s166 = sphi 0, %s163
      %s167 = sphi 0, %s166
      %s183 = sphi 0, %s167
      %s189 = sphi 0, %s191
      %s192 = sphi 0, %s189
      %s193 = sphi 0, %s192
      %s209 = sphi 0, %s193
      %s215 = sphi 0, %s217
      %s218 = sphi 0, %s215
      %s219 = sphi 0, %s218
      %s235 = sphi 0, %s219
      %s241 = sphi 0, %s243
      %s244 = sphi 0, %s241
      %s245 = sphi 0, %s244
      %s261 = sphi 0, %s245
      %s265 = sphi 0, %s265
      %s267 = sphi 0, %s265
      %s268 = sphi 0, %s267
      %s282 = sphi 0, %s268
    $region4: #{tpu_custom_call.1} parent=1 // loop_header_branch
      %41 = sbr.rel (%p39) target = $region8
    $region5: #{tpu_custom_call.1} parent=1 // loop_body
      %s43 = ssub.s32 %s38, 1
      %s44 = ssub.s32 %s38, 2
      %s45 = sadd.s32 %s38, 1
      %s47 = sadd.s32 %s46, 1
      %p50 = scmp.eq.s32.totalorder %s38, 1
      %p51 = scmp.ne.s32.totalorder %s46, %s48
      %p52 = scmp.eq.s32.totalorder %s38, 0
      %p53 = por %p51, %p52
      %p54 = scmp.ne.s32.totalorder %s46, %s48
      %p55 = scmp.eq.s32.totalorder %s43, 1
      %p56 = por %p54, %p55
      %p57 = scmp.ne.s32.totalorder %s48, %s49
      %p58 = scmp.eq.s32.totalorder %s43, 0
      %p59 = por %p57, %p58
      %p60 = scmp.ne.s32.totalorder %s48, %s49
      %p61 = scmp.eq.s32.totalorder %s44, 1
      %p62 = por %p60, %p61
      %p64 = scmp.ne.s32.totalorder %s49, %s63
      %p65 = scmp.eq.s32.totalorder %s44, 0
      %p66 = por %p64, %p65
      %s68 = sadd.s32 %s67, 1
      %p71 = scmp.eq.s32.totalorder %s38, 1
      %p72 = scmp.ne.s32.totalorder %s67, %s69
      %p73 = scmp.eq.s32.totalorder %s38, 0
      %p74 = por %p72, %p73
      %p75 = scmp.ne.s32.totalorder %s67, %s69
      %p76 = scmp.eq.s32.totalorder %s43, 1
      %p77 = por %p75, %p76
      %p78 = scmp.ne.s32.totalorder %s69, %s70
      %p79 = scmp.eq.s32.totalorder %s43, 0
      %p80 = por %p78, %p79
      %p81 = scmp.ne.s32.totalorder %s69, %s70
      %p82 = scmp.eq.s32.totalorder %s44, 1
      %p83 = por %p81, %p82
      %p85 = scmp.ne.s32.totalorder %s70, %s84
      %p86 = scmp.eq.s32.totalorder %s44, 0
      %p87 = por %p85, %p86
      %s89 = sadd.s32 %s88, 1
      %p92 = scmp.eq.s32.totalorder %s38, 1
      %p93 = scmp.ne.s32.totalorder %s88, %s90
      %p94 = scmp.eq.s32.totalorder %s38, 0
      %p95 = por %p93, %p94
      %p96 = scmp.ne.s32.totalorder %s88, %s90
      %p97 = scmp.eq.s32.totalorder %s43, 1
      %p98 = por %p96, %p97
      %p99 = scmp.ne.s32.totalorder %s90, %s91
      %p100 = scmp.eq.s32.totalorder %s43, 0
      %p101 = por %p99, %p100
      %p102 = scmp.ne.s32.totalorder %s90, %s91
      %p103 = scmp.eq.s32.totalorder %s44, 1
      %p104 = por %p102, %p103
      %p106 = scmp.ne.s32.totalorder %s91, %s105
      %p107 = scmp.eq.s32.totalorder %s44, 0
      %p108 = por %p106, %p107
      %s109 = ssub.s32 %s38, %s45
      %p110 = scmp.eq.s32.totalorder %s109, 0
      %s112 = sadd.s32 %s111, 1
      %s113 = scalar_select %p110, %s111, %s112
      %p116 = pneg %p110
      %p117 = scmp.eq.s32.totalorder %s38, 1
      %p118 = por %p116, %p117
      %p119 = scmp.ne.s32.totalorder %s111, %s114
      %p120 = scmp.eq.s32.totalorder %s38, 0
      %p121 = por %p119, %p120
      %p122 = scmp.ne.s32.totalorder %s111, %s114
      %p123 = scmp.eq.s32.totalorder %s43, 1
      %p124 = por %p122, %p123
      %p125 = scmp.ne.s32.totalorder %s114, %s115
      %p126 = scmp.eq.s32.totalorder %s43, 0
      %p127 = por %p125, %p126
      %p128 = scmp.ne.s32.totalorder %s114, %s115
      %p129 = scmp.eq.s32.totalorder %s44, 1
      %p130 = por %p128, %p129
      %p132 = scmp.ne.s32.totalorder %s115, %s131
      %p133 = scmp.eq.s32.totalorder %s44, 0
      %p134 = por %p132, %p133
      %s135 = ssub.s32 %s38, %s45
      %p136 = scmp.eq.s32.totalorder %s135, 0
      %s138 = sadd.s32 %s137, 1
      %s139 = scalar_select %p136, %s137, %s138
      %p142 = pneg %p136
      %p143 = scmp.eq.s32.totalorder %s38, 1
      %p144 = por %p142, %p143
      %p145 = scmp.ne.s32.totalorder %s137, %s140
      %p146 = scmp.eq.s32.totalorder %s38, 0
      %p147 = por %p145, %p146
      %p148 = scmp.ne.s32.totalorder %s137, %s140
      %p149 = scmp.eq.s32.totalorder %s43, 1
      %p150 = por %p148, %p149
      %p151 = scmp.ne.s32.totalorder %s140, %s141
      %p152 = scmp.eq.s32.totalorder %s43, 0
      %p153 = por %p151, %p152
      %p154 = scmp.ne.s32.totalorder %s140, %s141
      %p155 = scmp.eq.s32.totalorder %s44, 1
      %p156 = por %p154, %p155
      %p158 = scmp.ne.s32.totalorder %s141, %s157
      %p159 = scmp.eq.s32.totalorder %s44, 0
      %p160 = por %p158, %p159
      %s161 = ssub.s32 %s38, %s45
      %p162 = scmp.eq.s32.totalorder %s161, 0
      %s164 = sadd.s32 %s163, 1
      %s165 = scalar_select %p162, %s163, %s164
      %p168 = pneg %p162
      %p169 = scmp.eq.s32.totalorder %s38, 1
      %p170 = por %p168, %p169
      %p171 = scmp.ne.s32.totalorder %s163, %s166
      %p172 = scmp.eq.s32.totalorder %s38, 0
      %p173 = por %p171, %p172
      %p174 = scmp.ne.s32.totalorder %s163, %s166
      %p175 = scmp.eq.s32.totalorder %s43, 1
      %p176 = por %p174, %p175
      %p177 = scmp.ne.s32.totalorder %s166, %s167
      %p178 = scmp.eq.s32.totalorder %s43, 0
      %p179 = por %p177, %p178
      %p180 = scmp.ne.s32.totalorder %s166, %s167
      %p181 = scmp.eq.s32.totalorder %s44, 1
      %p182 = por %p180, %p181
      %p184 = scmp.ne.s32.totalorder %s167, %s183
      %p185 = scmp.eq.s32.totalorder %s44, 0
      %p186 = por %p184, %p185
      %s187 = ssub.s32 %s38, %s45
      %p188 = scmp.eq.s32.totalorder %s187, 0
      %s190 = sadd.s32 %s189, 1
      %s191 = scalar_select %p188, %s189, %s190
      %p194 = pneg %p188
      %p195 = scmp.eq.s32.totalorder %s38, 1
      %p196 = por %p194, %p195
      %p197 = scmp.ne.s32.totalorder %s189, %s192
      %p198 = scmp.eq.s32.totalorder %s38, 0
      %p199 = por %p197, %p198
      %p200 = scmp.ne.s32.totalorder %s189, %s192
      %p201 = scmp.eq.s32.totalorder %s43, 1
      %p202 = por %p200, %p201
      %p203 = scmp.ne.s32.totalorder %s192, %s193
      %p204 = scmp.eq.s32.totalorder %s43, 0
      %p205 = por %p203, %p204
      %p206 = scmp.ne.s32.totalorder %s192, %s193
      %p207 = scmp.eq.s32.totalorder %s44, 1
      %p208 = por %p206, %p207
      %p210 = scmp.ne.s32.totalorder %s193, %s209
      %p211 = scmp.eq.s32.totalorder %s44, 0
      %p212 = por %p210, %p211
      %s213 = ssub.s32 %s38, %s45
      %p214 = scmp.eq.s32.totalorder %s213, 0
      %s216 = sadd.s32 %s215, 1
      %s217 = scalar_select %p214, %s215, %s216
      %p220 = pneg %p214
      %p221 = scmp.eq.s32.totalorder %s38, 1
      %p222 = por %p220, %p221
      %p223 = scmp.ne.s32.totalorder %s215, %s218
      %p224 = scmp.eq.s32.totalorder %s38, 0
      %p225 = por %p223, %p224
      %p226 = scmp.ne.s32.totalorder %s215, %s218
      %p227 = scmp.eq.s32.totalorder %s43, 1
      %p228 = por %p226, %p227
      %p229 = scmp.ne.s32.totalorder %s218, %s219
      %p230 = scmp.eq.s32.totalorder %s43, 0
      %p231 = por %p229, %p230
      %p232 = scmp.ne.s32.totalorder %s218, %s219
      %p233 = scmp.eq.s32.totalorder %s44, 1
      %p234 = por %p232, %p233
      %p236 = scmp.ne.s32.totalorder %s219, %s235
      %p237 = scmp.eq.s32.totalorder %s44, 0
      %p238 = por %p236, %p237
      %s239 = ssub.s32 %s38, %s45
      %p240 = scmp.eq.s32.totalorder %s239, 0
      %s242 = sadd.s32 %s241, 1
      %s243 = scalar_select %p240, %s241, %s242
      %p246 = pneg %p240
      %p247 = scmp.eq.s32.totalorder %s38, 1
      %p248 = por %p246, %p247
      %p249 = scmp.ne.s32.totalorder %s241, %s244
      %p250 = scmp.eq.s32.totalorder %s38, 0
      %p251 = por %p249, %p250
      %p252 = scmp.ne.s32.totalorder %s241, %s244
      %p253 = scmp.eq.s32.totalorder %s43, 1
      %p254 = por %p252, %p253
      %p255 = scmp.ne.s32.totalorder %s244, %s245
      %p256 = scmp.eq.s32.totalorder %s43, 0
      %p257 = por %p255, %p256
      %p258 = scmp.ne.s32.totalorder %s244, %s245
      %p259 = scmp.eq.s32.totalorder %s44, 1
      %p260 = por %p258, %p259
      %p262 = scmp.ne.s32.totalorder %s245, %s261
      %p263 = scmp.eq.s32.totalorder %s44, 0
      %p264 = por %p262, %p263
      %s266 = sadd.s32 %s265, 1
      %p269 = scmp.eq.s32.totalorder %s38, 1
      %p270 = scmp.ne.s32.totalorder %s265, %s267
      %p271 = scmp.eq.s32.totalorder %s38, 0
      %p272 = por %p270, %p271
      %p273 = scmp.ne.s32.totalorder %s265, %s267
      %p274 = scmp.eq.s32.totalorder %s43, 1
      %p275 = por %p273, %p274
      %p276 = scmp.ne.s32.totalorder %s267, %s268
      %p277 = scmp.eq.s32.totalorder %s43, 0
      %p278 = por %p276, %p277
      %p279 = scmp.ne.s32.totalorder %s267, %s268
      %p280 = scmp.eq.s32.totalorder %s44, 1
      %p281 = por %p279, %p280
      %p283 = scmp.ne.s32.totalorder %s268, %s282
      %p284 = scmp.eq.s32.totalorder %s44, 0
      %p285 = por %p283, %p284
      %p286 = scmp.le.s32.totalorder 1, %s38
      %p287 = scmp.lt.s32.totalorder %s38, 3
      %p288 = pnand %p286, %p287
      %p289 = pneg %p288
      // Predicated region
      $region9: #{tpu_custom_call.1} parent=5 // pred_check
        _
      $region10: #{tpu_custom_call.1} parent=5 // pred_check_branch
        %291 = sbr.rel (%p288) target = $region12
      $region11: #{tpu_custom_call.1} parent=5 // pred_region
        %s292 = ssub.s32 %s38, 1
        // Predicated region
        $region13: #{tpu_custom_call.1} parent=11 // pred_check
          %p293 = pneg %p59
        $region14: #{tpu_custom_call.1} parent=11 // pred_check_branch
          %295 = sbr.rel (%p293) target = $region16
        $region15: #{tpu_custom_call.1} parent=11 // pred_region
          _
        $region16: #{tpu_custom_call.1} parent=11 // pred_fallthru
          _
        // Predicated region
        $region17: #{tpu_custom_call.1} parent=11 // pred_check
          %p296 = pneg %p80
        $region18: #{tpu_custom_call.1} parent=11 // pred_check_branch
          %298 = sbr.rel (%p296) target = $region20
        $region19: #{tpu_custom_call.1} parent=11 // pred_region
          _
        $region20: #{tpu_custom_call.1} parent=11 // pred_fallthru
          _
        // Predicated region
        $region21: #{tpu_custom_call.1} parent=11 // pred_check
          %p299 = pneg %p101
        $region22: #{tpu_custom_call.1} parent=11 // pred_check_branch
          %301 = sbr.rel (%p299) target = $region24
        $region23: #{tpu_custom_call.1} parent=11 // pred_region
          %303 = vsyncadd [#allocation11], 0
          %s305 = sshll.u32 %s4, 4
          %s306 = int_to_ptr.vmem [resolvable:$true] %s305
          %308 = dma.vmem_to_smem %s306, 16, [#allocation8], [#allocation11]
        $region24: #{tpu_custom_call.1} parent=11 // pred_fallthru
          _
      $region12: #{tpu_custom_call.1} parent=5 // pred_fallthru
        _
      %p309 = scmp.lt.s32.totalorder %s38, 2
      // Predicated region
      $region25: #{tpu_custom_call.1} parent=5 // pred_check
        %p310 = pneg %p309
      $region26: #{tpu_custom_call.1} parent=5 // pred_check_branch
        %312 = sbr.rel (%p310) target = $region28
      $region27: #{tpu_custom_call.1} parent=5 // pred_region
        // Predicated region
        $region29: #{tpu_custom_call.1} parent=27 // pred_check
          %p313 = pneg %p121
        $region30: #{tpu_custom_call.1} parent=27 // pred_check_branch
          %315 = sbr.rel (%p313) target = $region32
        $region31: #{tpu_custom_call.1} parent=27 // pred_region
          %p316 = scmp.lt.s32.totalorder %s38, 1
          %s317 = scalar_select %p316, %s38, 1
          %s318 = smul.addr %s317, 8
          %s319 = scalar_lea.vmem %s5, %s318
        $region32: #{tpu_custom_call.1} parent=27 // pred_fallthru
          _
        // Predicated region
        $region33: #{tpu_custom_call.1} parent=27 // pred_check
          %p320 = pneg %p147
        $region34: #{tpu_custom_call.1} parent=27 // pred_check_branch
          %322 = sbr.rel (%p320) target = $region36
        $region35: #{tpu_custom_call.1} parent=27 // pred_region
          %p323 = scmp.lt.s32.totalorder %s38, 1
          %s324 = scalar_select %p323, %s38, 1
          %s325 = scalar_lea.vmem %s6, %s324
        $region36: #{tpu_custom_call.1} parent=27 // pred_fallthru
          _
        // Predicated region
        $region37: #{tpu_custom_call.1} parent=27 // pred_check
          %p326 = pneg %p173
        $region38: #{tpu_custom_call.1} parent=27 // pred_check_branch
          %328 = sbr.rel (%p326) target = $region40
        $region39: #{tpu_custom_call.1} parent=27 // pred_region
          %s329 = sand.u32 %s163, 1
          %s330 = scalar_lea.sflag [#allocation9], %s329
          %s331 = sand.u32 %s163, 1
          %s332 = smul.addr %s331, 128
          %s333 = scalar_lea.vmem [#allocation12], %s332
          %335 = vsyncadd %s330, 0
          %s336 = smul.addr %s38, 16
          %s337 = smul.addr %s336, 8
          %s338 = scalar_lea.hbm %s7, %s337
          %s339 = sshll.u32 %s338, 4
          %s340 = int_to_ptr.hbm [resolvable:$true] %s339
          %s341 = sshll.u32 %s333, 4
          %s342 = int_to_ptr.vmem [resolvable:$true] %s341
          %347 = dma.hbm_to_vmem [thread:$0]  %s340, 2048, %s342, %s330, 128, 128, 8
        $region40: #{tpu_custom_call.1} parent=27 // pred_fallthru
          _
        // Predicated region
        $region41: #{tpu_custom_call.1} parent=27 // pred_check
          %p348 = pneg %p199
        $region42: #{tpu_custom_call.1} parent=27 // pred_check_branch
          %350 = sbr.rel (%p348) target = $region44
        $region43: #{tpu_custom_call.1} parent=27 // pred_region
          %p351 = scmp.lt.s32.totalorder %s38, 1
          %s352 = scalar_select %p351, %s38, 1
          %s353 = scalar_lea.vmem %s8, %s352
        $region44: #{tpu_custom_call.1} parent=27 // pred_fallthru
          _
        // Predicated region
        $region45: #{tpu_custom_call.1} parent=27 // pred_check
          %p354 = pneg %p225
        $region46: #{tpu_custom_call.1} parent=27 // pred_check_branch
          %356 = sbr.rel (%p354) target = $region48
        $region47: #{tpu_custom_call.1} parent=27 // pred_region
          %s357 = sand.u32 %s215, 1
          %s358 = scalar_lea.sflag [#allocation14], %s357
          %s359 = sand.u32 %s215, 1
          %s360 = smul.addr %s359, 128
          %s361 = scalar_lea.vmem [#allocation13], %s360
          %363 = vsyncadd %s358, 0
          %s364 = smul.addr %s38, 16
          %s365 = smul.addr %s364, 8
          %s366 = scalar_lea.hbm %s9, %s365
          %s367 = sshll.u32 %s366, 4
          %s368 = int_to_ptr.hbm [resolvable:$true] %s367
          %s369 = sshll.u32 %s361, 4
          %s370 = int_to_ptr.vmem [resolvable:$true] %s369
          %375 = dma.hbm_to_vmem [thread:$0]  %s368, 2048, %s370, %s358, 128, 128, 8
        $region48: #{tpu_custom_call.1} parent=27 // pred_fallthru
          _
        // Predicated region
        $region49: #{tpu_custom_call.1} parent=27 // pred_check
          %p376 = pneg %p251
        $region50: #{tpu_custom_call.1} parent=27 // pred_check_branch
          %378 = sbr.rel (%p376) target = $region52
        $region51: #{tpu_custom_call.1} parent=27 // pred_region
          %p379 = scmp.lt.s32.totalorder %s38, 1
          %s380 = scalar_select %p379, %s38, 1
          %s381 = scalar_lea.vmem %s10, %s380
        $region52: #{tpu_custom_call.1} parent=27 // pred_fallthru
          _
      $region28: #{tpu_custom_call.1} parent=5 // pred_fallthru
        _
      %p382 = scmp.le.s32.totalorder 1, %s38
      %p383 = scmp.lt.s32.totalorder %s38, 3
      %p384 = pnand %p382, %p383
      %p385 = pneg %p384
      // Predicated region
      $region53: #{tpu_custom_call.1} parent=5 // pred_check
        _
      $region54: #{tpu_custom_call.1} parent=5 // pred_check_branch
        %387 = sbr.rel (%p384) target = $region56
      $region55: #{tpu_custom_call.1} parent=5 // pred_region
        %s388 = ssub.s32 %s38, 1
        // Predicated region
        $region57: #{tpu_custom_call.1} parent=55 // pred_check
          %p389 = pneg %p101
        $region58: #{tpu_custom_call.1} parent=55 // pred_check_branch
          %391 = sbr.rel (%p389) target = $region60
        $region59: #{tpu_custom_call.1} parent=55 // pred_region
          %393 = dma.done [#allocation11], 16
        $region60: #{tpu_custom_call.1} parent=55 // pred_fallthru
          _
        %s394 = sand.u32 %s166, 1
        %s395 = scalar_lea.sflag [#allocation9], %s394
        %s396 = sand.u32 %s166, 1
        %s397 = smul.addr %s396, 128
        %s398 = scalar_lea.vmem [#allocation12], %s397
        // Predicated region
        $region61: #{tpu_custom_call.1} parent=55 // pred_check
          %p399 = pneg %p179
        $region62: #{tpu_custom_call.1} parent=55 // pred_check_branch
          %401 = sbr.rel (%p399) target = $region64
        $region63: #{tpu_custom_call.1} parent=55 // pred_region
          %403 = dma.done %s395, 2048
        $region64: #{tpu_custom_call.1} parent=55 // pred_fallthru
          _
        %s404 = sand.u32 %s218, 1
        %s405 = scalar_lea.sflag [#allocation14], %s404
        %s406 = sand.u32 %s218, 1
        %s407 = smul.addr %s406, 128
        %s408 = scalar_lea.vmem [#allocation13], %s407
        // Predicated region
        $region65: #{tpu_custom_call.1} parent=55 // pred_check
          %p409 = pneg %p231
        $region66: #{tpu_custom_call.1} parent=55 // pred_check_branch
          %411 = sbr.rel (%p409) target = $region68
        $region67: #{tpu_custom_call.1} parent=55 // pred_region
          %413 = dma.done %s405, 2048
        $region68: #{tpu_custom_call.1} parent=55 // pred_fallthru
          _
        %414 = sfence
        %p415 = pneg %p59
        %p416 = pneg %p56
        %p417 = pneg %p80
        %p418 = pneg %p77
        %p419 = pneg %p101
        %p420 = pneg %p98
        %p421 = scmp.lt.s32.totalorder %s43, 1
        %s422 = scalar_select %p421, %s43, 1
        %s423 = smul.addr %s422, 8
        %s424 = scalar_lea.vmem %s5, %s423
        %p425 = pneg %p127
        %p426 = pneg %p124
        %p427 = scmp.lt.s32.totalorder %s43, 1
        %s428 = scalar_select %p427, %s43, 1
        %s429 = scalar_lea.vmem %s6, %s428
        %p430 = pneg %p153
        %p431 = pneg %p150
        %s432 = sand.u32 %s166, 1
        %s433 = scalar_lea.sflag [#allocation9], %s432
        %s434 = sand.u32 %s166, 1
        %s435 = smul.addr %s434, 128
        %s436 = scalar_lea.vmem [#allocation12], %s435
        %p437 = pneg %p179
        %p438 = pneg %p176
        %p439 = scmp.lt.s32.totalorder %s43, 1
        %s440 = scalar_select %p439, %s43, 1
        %s441 = scalar_lea.vmem %s8, %s440
        %p442 = pneg %p205
        %p443 = pneg %p202
        %s444 = sand.u32 %s218, 1
        %s445 = scalar_lea.sflag [#allocation14], %s444
        %s446 = sand.u32 %s218, 1
        %s447 = smul.addr %s446, 128
        %s448 = scalar_lea.vmem [#allocation13], %s447
        %p449 = pneg %p231
        %p450 = pneg %p228
        %p451 = scmp.lt.s32.totalorder %s43, 1
        %s452 = scalar_select %p451, %s43, 1
        %s453 = scalar_lea.vmem %s10, %s452
        %p454 = pneg %p257
        %p455 = pneg %p254
        %p456 = pneg %p278
        %p457 = pneg %p275
        %p458 = scmp.lt.s32.totalorder %s43, 1
        %s459 = scalar_select %p458, %s43, 1
        %s460 = smul.addr %s459, 8
        %s461 = scalar_lea.vmem %s5, %s460
        %p462 = scmp.lt.s32.totalorder %s43, 1
        %s463 = scalar_select %p462, %s43, 1
        %s464 = scalar_lea.vmem %s6, %s463
        %p465 = scmp.lt.s32.totalorder %s43, 1
        %s466 = scalar_select %p465, %s43, 1
        %s467 = scalar_lea.vmem %s8, %s466
        %p468 = scmp.lt.s32.totalorder %s43, 1
        %s469 = scalar_select %p468, %s43, 1
        %s470 = scalar_lea.vmem %s10, %s469
        %p471 = scmp.eq.s32.totalorder %s43, 0
        // Predicated region
        $region69: #{tpu_custom_call.1} parent=55 // pred_check
          %p472 = pneg %p471
        $region70: #{tpu_custom_call.1} parent=55 // pred_check_branch
          %474 = sbr.rel (%p472) target = $region72
        $region71: #{tpu_custom_call.1} parent=55 // pred_region
          %v475 = vld [vmem:[%s2] sm:$0xff]
          %v476 = vld [vmem:[%s2 + $0x8] sm:$0xff]
          %477 = vst [vmem:[#allocation15] sm:$0xff] %v475
          %478 = vst [vmem:[#allocation15 + $0x8] sm:$0xff] %v476
        $region72: #{tpu_custom_call.1} parent=55 // pred_fallthru
          _
        %v479 = vld [vmem:[%s3] sm:$0xff]
        %v480 = vld [vmem:[%s3 + $0x8] sm:$0xff]
        %v481 = vld [vmem:[%s3 + $0x10] sm:$0xff]
        %v482 = vld [vmem:[%s3 + $0x18] sm:$0xff]
        %v483 = vld [vmem:[%s461] sm:$0xff]
        %v484 = vld [vmem:[%s464] sm:$0x1]
        %v486 = vperm.slane %v484, 0
        %vm488 = vcmask 64512
        %v490 = vsel %vm488, %v479, 0
        %v493 = vsel %vm488, %v480, 0
        %v496 = vsel %vm488, %v481, 0
        %v499 = vsel %vm488, %v482, 0
        %501 = vmatpush.msra.mxu0 0.0
        %502 = vmatpush.msra.mxu0 0.0
        %503 = vmatpush.msra.mxu0 0.0
        %504 = vmatpush.msra.mxu0 0.0
        %505 = vmatpush.msra.mxu0 0.0
        %506 = vmatpush.msra.mxu0 0.0
        %507 = vmatpush.msra.mxu0 0.0
        %508 = vmatpush.msra.mxu0 0.0
        %509 = vmatpush.msra.mxu0 0.0
        %510 = vmatpush.msra.mxu0 0.0
        %511 = vmatpush.msra.mxu0 0.0
        %512 = vmatpush.msra.mxu0 0.0
        %513 = vmatpush.msra.mxu0 0.0
        %514 = vmatpush.msra.mxu0 0.0
        %515 = vmatpush.msra.mxu0 0.0
        %516 = vmatpush.msra.mxu0 %v483
        %517 = vmatmul.f32.gmra.mxu0 %v490
        %v518 = vpop.f32.mrf.mxu0
        %v519 = vadd.f32 %v486, %v518
        %520 = vmatmul.f32.gmra.mxu0 %v493
        %v521 = vpop.f32.mrf.mxu0
        %v522 = vadd.f32 %v486, %v521
        %523 = vmatmul.f32.gmra.mxu0 %v496
        %v524 = vpop.f32.mrf.mxu0
        %v525 = vadd.f32 %v486, %v524
        %526 = vmatmul.f32.gmra.mxu0 %v499
        %v527 = vpop.f32.mrf.mxu0
        %v528 = vadd.f32 %v486, %v527
        %529 = vdwg.mxu0
        %530 = vst [vmem:[#allocation3] sm:$0xff] %v519
        %531 = vst [vmem:[#allocation3 + $0x8] sm:$0xff] %v522
        %532 = vst [vmem:[#allocation3 + $0x10] sm:$0xff] %v525
        %533 = vst [vmem:[#allocation3 + $0x18] sm:$0xff] %v528
        %s534 = sld [smem:[#allocation7]]
        %s535 = scalar_lea.vmem [#allocation15], %s534
        %v536 = vld [vmem:[%s535] sm:$0x1]
        %537 = vst [vmem:[#allocation4] sm:$0x1] %v536
        %s538 = sld [smem:[#allocation7 + $0x1]]
        %s539 = scalar_lea.vmem [#allocation15], %s538
        %v540 = vld [vmem:[%s539] sm:$0x1]
        %541 = vst [vmem:[#allocation4 + $0x1] sm:$0x1] %v540
        %s542 = sld [smem:[#allocation7 + $0x2]]
        %s543 = scalar_lea.vmem [#allocation15], %s542
        %v544 = vld [vmem:[%s543] sm:$0x1]
        %545 = vst [vmem:[#allocation4 + $0x2] sm:$0x1] %v544
        %s546 = sld [smem:[#allocation7 + $0x3]]
        %s547 = scalar_lea.vmem [#allocation15], %s546
        %v548 = vld [vmem:[%s547] sm:$0x1]
        %549 = vst [vmem:[#allocation4 + $0x3] sm:$0x1] %v548
        %s550 = sld [smem:[#allocation7 + $0x4]]
        %s551 = scalar_lea.vmem [#allocation15], %s550
        %v552 = vld [vmem:[%s551] sm:$0x1]
        %553 = vst [vmem:[#allocation4 + $0x4] sm:$0x1] %v552
        %s554 = sld [smem:[#allocation7 + $0x5]]
        %s555 = scalar_lea.vmem [#allocation15], %s554
        %v556 = vld [vmem:[%s555] sm:$0x1]
        %557 = vst [vmem:[#allocation4 + $0x5] sm:$0x1] %v556
        %s558 = sld [smem:[#allocation7 + $0x6]]
        %s559 = scalar_lea.vmem [#allocation15], %s558
        %v560 = vld [vmem:[%s559] sm:$0x1]
        %561 = vst [vmem:[#allocation4 + $0x6] sm:$0x1] %v560
        %s562 = sld [smem:[#allocation7 + $0x7]]
        %s563 = scalar_lea.vmem [#allocation15], %s562
        %v564 = vld [vmem:[%s563] sm:$0x1]
        %565 = vst [vmem:[#allocation4 + $0x7] sm:$0x1] %v564
        %s566 = sld [smem:[#allocation7 + $0x8]]
        %s567 = scalar_lea.vmem [#allocation15], %s566
        %v568 = vld [vmem:[%s567] sm:$0x1]
        %569 = vst [vmem:[#allocation4 + $0x8] sm:$0x1] %v568
        %s570 = sld [smem:[#allocation7 + $0x9]]
        %s571 = scalar_lea.vmem [#allocation15], %s570
        %v572 = vld [vmem:[%s571] sm:$0x1]
        %573 = vst [vmem:[#allocation4 + $0x9] sm:$0x1] %v572
        %s574 = sld [smem:[#allocation7 + $0xa]]
        %s575 = scalar_lea.vmem [#allocation15], %s574
        %v576 = vld [vmem:[%s575] sm:$0x1]
        %577 = vst [vmem:[#allocation4 + $0xa] sm:$0x1] %v576
        %s578 = sld [smem:[#allocation7 + $0xb]]
        %s579 = scalar_lea.vmem [#allocation15], %s578
        %v580 = vld [vmem:[%s579] sm:$0x1]
        %581 = vst [vmem:[#allocation4 + $0xb] sm:$0x1] %v580
        %s582 = sld [smem:[#allocation7 + $0xc]]
        %s583 = scalar_lea.vmem [#allocation15], %s582
        %v584 = vld [vmem:[%s583] sm:$0x1]
        %585 = vst [vmem:[#allocation4 + $0xc] sm:$0x1] %v584
        %s586 = sld [smem:[#allocation7 + $0xd]]
        %s587 = scalar_lea.vmem [#allocation15], %s586
        %v588 = vld [vmem:[%s587] sm:$0x1]
        %589 = vst [vmem:[#allocation4 + $0xd] sm:$0x1] %v588
        %s590 = sld [smem:[#allocation7 + $0xe]]
        %s591 = scalar_lea.vmem [#allocation15], %s590
        %v592 = vld [vmem:[%s591] sm:$0x1]
        %593 = vst [vmem:[#allocation4 + $0xe] sm:$0x1] %v592
        %s594 = sld [smem:[#allocation7 + $0xf]]
        %s595 = scalar_lea.vmem [#allocation15], %s594
        %v596 = vld [vmem:[%s595] sm:$0x1]
        %597 = vst [vmem:[#allocation4 + $0xf] sm:$0x1] %v596
        %s598 = sld [smem:[#allocation7 + $0x10]]
        %s599 = scalar_lea.vmem [#allocation15], %s598
        %v600 = vld [vmem:[%s599] sm:$0x1]
        %601 = vst [vmem:[#allocation4 + $0x10] sm:$0x1] %v600
        %s602 = sld [smem:[#allocation7 + $0x11]]
        %s603 = scalar_lea.vmem [#allocation15], %s602
        %v604 = vld [vmem:[%s603] sm:$0x1]
        %605 = vst [vmem:[#allocation4 + $0x11] sm:$0x1] %v604
        %s606 = sld [smem:[#allocation7 + $0x12]]
        %s607 = scalar_lea.vmem [#allocation15], %s606
        %v608 = vld [vmem:[%s607] sm:$0x1]
        %609 = vst [vmem:[#allocation4 + $0x12] sm:$0x1] %v608
        %s610 = sld [smem:[#allocation7 + $0x13]]
        %s611 = scalar_lea.vmem [#allocation15], %s610
        %v612 = vld [vmem:[%s611] sm:$0x1]
        %613 = vst [vmem:[#allocation4 + $0x13] sm:$0x1] %v612
        %s614 = sld [smem:[#allocation7 + $0x14]]
        %s615 = scalar_lea.vmem [#allocation15], %s614
        %v616 = vld [vmem:[%s615] sm:$0x1]
        %617 = vst [vmem:[#allocation4 + $0x14] sm:$0x1] %v616
        %s618 = sld [smem:[#allocation7 + $0x15]]
        %s619 = scalar_lea.vmem [#allocation15], %s618
        %v620 = vld [vmem:[%s619] sm:$0x1]
        %621 = vst [vmem:[#allocation4 + $0x15] sm:$0x1] %v620
        %s622 = sld [smem:[#allocation7 + $0x16]]
        %s623 = scalar_lea.vmem [#allocation15], %s622
        %v624 = vld [vmem:[%s623] sm:$0x1]
        %625 = vst [vmem:[#allocation4 + $0x16] sm:$0x1] %v624
        %s626 = sld [smem:[#allocation7 + $0x17]]
        %s627 = scalar_lea.vmem [#allocation15], %s626
        %v628 = vld [vmem:[%s627] sm:$0x1]
        %629 = vst [vmem:[#allocation4 + $0x17] sm:$0x1] %v628
        %s630 = sld [smem:[#allocation7 + $0x18]]
        %s631 = scalar_lea.vmem [#allocation15], %s630
        %v632 = vld [vmem:[%s631] sm:$0x1]
        %633 = vst [vmem:[#allocation4 + $0x18] sm:$0x1] %v632
        %s634 = sld [smem:[#allocation7 + $0x19]]
        %s635 = scalar_lea.vmem [#allocation15], %s634
        %v636 = vld [vmem:[%s635] sm:$0x1]
        %637 = vst [vmem:[#allocation4 + $0x19] sm:$0x1] %v636
        %s638 = sld [smem:[#allocation7 + $0x1a]]
        %s639 = scalar_lea.vmem [#allocation15], %s638
        %v640 = vld [vmem:[%s639] sm:$0x1]
        %641 = vst [vmem:[#allocation4 + $0x1a] sm:$0x1] %v640
        %s642 = sld [smem:[#allocation7 + $0x1b]]
        %s643 = scalar_lea.vmem [#allocation15], %s642
        %v644 = vld [vmem:[%s643] sm:$0x1]
        %645 = vst [vmem:[#allocation4 + $0x1b] sm:$0x1] %v644
        %s646 = sld [smem:[#allocation7 + $0x1c]]
        %s647 = scalar_lea.vmem [#allocation15], %s646
        %v648 = vld [vmem:[%s647] sm:$0x1]
        %649 = vst [vmem:[#allocation4 + $0x1c] sm:$0x1] %v648
        %s650 = sld [smem:[#allocation7 + $0x1d]]
        %s651 = scalar_lea.vmem [#allocation15], %s650
        %v652 = vld [vmem:[%s651] sm:$0x1]
        %653 = vst [vmem:[#allocation4 + $0x1d] sm:$0x1] %v652
        %s654 = sld [smem:[#allocation7 + $0x1e]]
        %s655 = scalar_lea.vmem [#allocation15], %s654
        %v656 = vld [vmem:[%s655] sm:$0x1]
        %657 = vst [vmem:[#allocation4 + $0x1e] sm:$0x1] %v656
        %s658 = sld [smem:[#allocation7 + $0x1f]]
        %s659 = scalar_lea.vmem [#allocation15], %s658
        %v660 = vld [vmem:[%s659] sm:$0x1]
        %661 = vst [vmem:[#allocation4 + $0x1f] sm:$0x1] %v660
        %v662 = vld [vmem:[#allocation4] sm:$0xff]
        %v663 = vld [vmem:[#allocation4 + $0x8] sm:$0xff]
        %v664 = vld [vmem:[#allocation4 + $0x10] sm:$0xff]
        %v665 = vld [vmem:[#allocation4 + $0x18] sm:$0xff]
        %v666 = vld [vmem:[#allocation3] sm:$0xff]
        %v667 = vld [vmem:[#allocation3 + $0x8] sm:$0xff]
        %v668 = vld [vmem:[#allocation3 + $0x10] sm:$0xff]
        %v669 = vld [vmem:[#allocation3 + $0x18] sm:$0xff]
        %v670 = vadd.f32 %v662, %v666
        %v671 = vadd.f32 %v663, %v667
        %v672 = vadd.f32 %v664, %v668
        %v673 = vadd.f32 %v665, %v669
        %v674 = vmax.f32 %v670, 0.0
        %v675 = vmax.f32 %v671, 0.0
        %v676 = vmax.f32 %v672, 0.0
        %v677 = vmax.f32 %v673, 0.0
        %678 = vst [vmem:[#allocation3] sm:$0xff] %v674
        %679 = vst [vmem:[#allocation3 + $0x8] sm:$0xff] %v675
        %680 = vst [vmem:[#allocation3 + $0x10] sm:$0xff] %v676
        %681 = vst [vmem:[#allocation3 + $0x18] sm:$0xff] %v677
        %s682 = sld [smem:[#allocation8 + %s43]]
        %s683 = sadd.f32 %s682, 1.0
        %v684 = vld [vmem:[#allocation15] sm:$0xff]
        %v685 = vld [vmem:[#allocation15 + $0x8] sm:$0xff]
        %v686 = vstv %s683
        %v687 = vmul.f32 %v686, %v684
        %v688 = vmul.f32 %v686, %v685
        %689 = vst [vmem:[#allocation2] sm:$0xff] %v687
        %690 = vst [vmem:[#allocation2 + $0x8] sm:$0xff] %v688
        %s691 = sld [smem:[#allocation6]]
        %s692 = sld [smem:[#allocation6 + $0x1]]
        // While loop
        $region73: #{tpu_custom_call.1} parent=55 // loop_pre_header
          _
        $region74: #{tpu_custom_call.1} parent=55 // loop_header
          %s694 = sphi %s691, %s696
          %p695 = scmp.ge.s32.totalorder %s694, %s692
        $region75: #{tpu_custom_call.1} parent=55 // loop_header_branch
          %698 = sbr.rel (%p695) target = $region79
        $region76: #{tpu_custom_call.1} parent=55 // loop_body
          %v699 = vld [vmem:[#allocation2] sm:$0x1]
          %s700 = scalar_lea.vmem [#allocation3], %s694
          %v701 = vld [vmem:[%s700] sm:$0x1]
          %v702 = vadd.f32 %v699, %v701
          %703 = vst [vmem:[#allocation2] sm:$0x1] %v702
        $region77: #{tpu_custom_call.1} parent=55 // loop_footer
          %s696 = sadd.s32 %s694, 1
        $region78: #{tpu_custom_call.1} parent=55 // loop_footer_branch
          %693 = sbr.rel target = $region74
        $region79: #{tpu_custom_call.1} parent=55 // loop_exit
          _
        %s704 = sld [smem:[#allocation6 + $0x1]]
        %s705 = sld [smem:[#allocation6 + $0x2]]
        // While loop
        $region80: #{tpu_custom_call.1} parent=55 // loop_pre_header
          _
        $region81: #{tpu_custom_call.1} parent=55 // loop_header
          %s707 = sphi %s704, %s709
          %p708 = scmp.ge.s32.totalorder %s707, %s705
        $region82: #{tpu_custom_call.1} parent=55 // loop_header_branch
          %711 = sbr.rel (%p708) target = $region86
        $region83: #{tpu_custom_call.1} parent=55 // loop_body
          %v712 = vld [vmem:[#allocation2 + $0x1] sm:$0x1]
          %s713 = scalar_lea.vmem [#allocation3], %s707
          %v714 = vld [vmem:[%s713] sm:$0x1]
          %v715 = vadd.f32 %v712, %v714
          %716 = vst [vmem:[#allocation2 + $0x1] sm:$0x1] %v715
        $region84: #{tpu_custom_call.1} parent=55 // loop_footer
          %s709 = sadd.s32 %s707, 1
        $region85: #{tpu_custom_call.1} parent=55 // loop_footer_branch
          %706 = sbr.rel target = $region81
        $region86: #{tpu_custom_call.1} parent=55 // loop_exit
          _
        %s717 = sld [smem:[#allocation6 + $0x2]]
        %s718 = sld [smem:[#allocation6 + $0x3]]
        // While loop
        $region87: #{tpu_custom_call.1} parent=55 // loop_pre_header
          _
        $region88: #{tpu_custom_call.1} parent=55 // loop_header
          %s720 = sphi %s717, %s722
          %p721 = scmp.ge.s32.totalorder %s720, %s718
        $region89: #{tpu_custom_call.1} parent=55 // loop_header_branch
          %724 = sbr.rel (%p721) target = $region93
        $region90: #{tpu_custom_call.1} parent=55 // loop_body
          %v725 = vld [vmem:[#allocation2 + $0x2] sm:$0x1]
          %s726 = scalar_lea.vmem [#allocation3], %s720
          %v727 = vld [vmem:[%s726] sm:$0x1]
          %v728 = vadd.f32 %v725, %v727
          %729 = vst [vmem:[#allocation2 + $0x2] sm:$0x1] %v728
        $region91: #{tpu_custom_call.1} parent=55 // loop_footer
          %s722 = sadd.s32 %s720, 1
        $region92: #{tpu_custom_call.1} parent=55 // loop_footer_branch
          %719 = sbr.rel target = $region88
        $region93: #{tpu_custom_call.1} parent=55 // loop_exit
          _
        %s730 = sld [smem:[#allocation6 + $0x3]]
        %s731 = sld [smem:[#allocation6 + $0x4]]
        // While loop
        $region94: #{tpu_custom_call.1} parent=55 // loop_pre_header
          _
        $region95: #{tpu_custom_call.1} parent=55 // loop_header
          %s733 = sphi %s730, %s735
          %p734 = scmp.ge.s32.totalorder %s733, %s731
        $region96: #{tpu_custom_call.1} parent=55 // loop_header_branch
          %737 = sbr.rel (%p734) target = $region100
        $region97: #{tpu_custom_call.1} parent=55 // loop_body
          %v738 = vld [vmem:[#allocation2 + $0x3] sm:$0x1]
          %s739 = scalar_lea.vmem [#allocation3], %s733
          %v740 = vld [vmem:[%s739] sm:$0x1]
          %v741 = vadd.f32 %v738, %v740
          %742 = vst [vmem:[#allocation2 + $0x3] sm:$0x1] %v741
        $region98: #{tpu_custom_call.1} parent=55 // loop_footer
          %s735 = sadd.s32 %s733, 1
        $region99: #{tpu_custom_call.1} parent=55 // loop_footer_branch
          %732 = sbr.rel target = $region95
        $region100: #{tpu_custom_call.1} parent=55 // loop_exit
          _
        %s743 = sld [smem:[#allocation6 + $0x4]]
        %s744 = sld [smem:[#allocation6 + $0x5]]
        // While loop
        $region101: #{tpu_custom_call.1} parent=55 // loop_pre_header
          _
        $region102: #{tpu_custom_call.1} parent=55 // loop_header
          %s746 = sphi %s743, %s748
          %p747 = scmp.ge.s32.totalorder %s746, %s744
        $region103: #{tpu_custom_call.1} parent=55 // loop_header_branch
          %750 = sbr.rel (%p747) target = $region107
        $region104: #{tpu_custom_call.1} parent=55 // loop_body
          %v751 = vld [vmem:[#allocation2 + $0x4] sm:$0x1]
          %s752 = scalar_lea.vmem [#allocation3], %s746
          %v753 = vld [vmem:[%s752] sm:$0x1]
          %v754 = vadd.f32 %v751, %v753
          %755 = vst [vmem:[#allocation2 + $0x4] sm:$0x1] %v754
        $region105: #{tpu_custom_call.1} parent=55 // loop_footer
          %s748 = sadd.s32 %s746, 1
        $region106: #{tpu_custom_call.1} parent=55 // loop_footer_branch
          %745 = sbr.rel target = $region102
        $region107: #{tpu_custom_call.1} parent=55 // loop_exit
          _
        %s756 = sld [smem:[#allocation6 + $0x5]]
        %s757 = sld [smem:[#allocation6 + $0x6]]
        // While loop
        $region108: #{tpu_custom_call.1} parent=55 // loop_pre_header
          _
        $region109: #{tpu_custom_call.1} parent=55 // loop_header
          %s759 = sphi %s756, %s761
          %p760 = scmp.ge.s32.totalorder %s759, %s757
        $region110: #{tpu_custom_call.1} parent=55 // loop_header_branch
          %763 = sbr.rel (%p760) target = $region114
        $region111: #{tpu_custom_call.1} parent=55 // loop_body
          %v764 = vld [vmem:[#allocation2 + $0x5] sm:$0x1]
          %s765 = scalar_lea.vmem [#allocation3], %s759
          %v766 = vld [vmem:[%s765] sm:$0x1]
          %v767 = vadd.f32 %v764, %v766
          %768 = vst [vmem:[#allocation2 + $0x5] sm:$0x1] %v767
        $region112: #{tpu_custom_call.1} parent=55 // loop_footer
          %s761 = sadd.s32 %s759, 1
        $region113: #{tpu_custom_call.1} parent=55 // loop_footer_branch
          %758 = sbr.rel target = $region109
        $region114: #{tpu_custom_call.1} parent=55 // loop_exit
          _
        %s769 = sld [smem:[#allocation6 + $0x6]]
        %s770 = sld [smem:[#allocation6 + $0x7]]
        // While loop
        $region115: #{tpu_custom_call.1} parent=55 // loop_pre_header
          _
        $region116: #{tpu_custom_call.1} parent=55 // loop_header
          %s772 = sphi %s769, %s774
          %p773 = scmp.ge.s32.totalorder %s772, %s770
        $region117: #{tpu_custom_call.1} parent=55 // loop_header_branch
          %776 = sbr.rel (%p773) target = $region121
        $region118: #{tpu_custom_call.1} parent=55 // loop_body
          %v777 = vld [vmem:[#allocation2 + $0x6] sm:$0x1]
          %s778 = scalar_lea.vmem [#allocation3], %s772
          %v779 = vld [vmem:[%s778] sm:$0x1]
          %v780 = vadd.f32 %v777, %v779
          %781 = vst [vmem:[#allocation2 + $0x6] sm:$0x1] %v780
        $region119: #{tpu_custom_call.1} parent=55 // loop_footer
          %s774 = sadd.s32 %s772, 1
        $region120: #{tpu_custom_call.1} parent=55 // loop_footer_branch
          %771 = sbr.rel target = $region116
        $region121: #{tpu_custom_call.1} parent=55 // loop_exit
          _
        %s782 = sld [smem:[#allocation6 + $0x7]]
        %s783 = sld [smem:[#allocation6 + $0x8]]
        // While loop
        $region122: #{tpu_custom_call.1} parent=55 // loop_pre_header
          _
        $region123: #{tpu_custom_call.1} parent=55 // loop_header
          %s785 = sphi %s782, %s787
          %p786 = scmp.ge.s32.totalorder %s785, %s783
        $region124: #{tpu_custom_call.1} parent=55 // loop_header_branch
          %789 = sbr.rel (%p786) target = $region128
        $region125: #{tpu_custom_call.1} parent=55 // loop_body
          %v790 = vld [vmem:[#allocation2 + $0x7] sm:$0x1]
          %s791 = scalar_lea.vmem [#allocation3], %s785
          %v792 = vld [vmem:[%s791] sm:$0x1]
          %v793 = vadd.f32 %v790, %v792
          %794 = vst [vmem:[#allocation2 + $0x7] sm:$0x1] %v793
        $region126: #{tpu_custom_call.1} parent=55 // loop_footer
          %s787 = sadd.s32 %s785, 1
        $region127: #{tpu_custom_call.1} parent=55 // loop_footer_branch
          %784 = sbr.rel target = $region123
        $region128: #{tpu_custom_call.1} parent=55 // loop_exit
          _
        %s795 = sld [smem:[#allocation6 + $0x8]]
        %s796 = sld [smem:[#allocation6 + $0x9]]
        // While loop
        $region129: #{tpu_custom_call.1} parent=55 // loop_pre_header
          _
        $region130: #{tpu_custom_call.1} parent=55 // loop_header
          %s798 = sphi %s795, %s800
          %p799 = scmp.ge.s32.totalorder %s798, %s796
        $region131: #{tpu_custom_call.1} parent=55 // loop_header_branch
          %802 = sbr.rel (%p799) target = $region135
        $region132: #{tpu_custom_call.1} parent=55 // loop_body
          %v803 = vld [vmem:[#allocation2 + $0x8] sm:$0x1]
          %s804 = scalar_lea.vmem [#allocation3], %s798
          %v805 = vld [vmem:[%s804] sm:$0x1]
          %v806 = vadd.f32 %v803, %v805
          %807 = vst [vmem:[#allocation2 + $0x8] sm:$0x1] %v806
        $region133: #{tpu_custom_call.1} parent=55 // loop_footer
          %s800 = sadd.s32 %s798, 1
        $region134: #{tpu_custom_call.1} parent=55 // loop_footer_branch
          %797 = sbr.rel target = $region130
        $region135: #{tpu_custom_call.1} parent=55 // loop_exit
          _
        %s808 = sld [smem:[#allocation6 + $0x9]]
        %s809 = sld [smem:[#allocation6 + $0xa]]
        // While loop
        $region136: #{tpu_custom_call.1} parent=55 // loop_pre_header
          _
        $region137: #{tpu_custom_call.1} parent=55 // loop_header
          %s811 = sphi %s808, %s813
          %p812 = scmp.ge.s32.totalorder %s811, %s809
        $region138: #{tpu_custom_call.1} parent=55 // loop_header_branch
          %815 = sbr.rel (%p812) target = $region142
        $region139: #{tpu_custom_call.1} parent=55 // loop_body
          %v816 = vld [vmem:[#allocation2 + $0x9] sm:$0x1]
          %s817 = scalar_lea.vmem [#allocation3], %s811
          %v818 = vld [vmem:[%s817] sm:$0x1]
          %v819 = vadd.f32 %v816, %v818
          %820 = vst [vmem:[#allocation2 + $0x9] sm:$0x1] %v819
        $region140: #{tpu_custom_call.1} parent=55 // loop_footer
          %s813 = sadd.s32 %s811, 1
        $region141: #{tpu_custom_call.1} parent=55 // loop_footer_branch
          %810 = sbr.rel target = $region137
        $region142: #{tpu_custom_call.1} parent=55 // loop_exit
          _
        %s821 = sld [smem:[#allocation6 + $0xa]]
        %s822 = sld [smem:[#allocation6 + $0xb]]
        // While loop
        $region143: #{tpu_custom_call.1} parent=55 // loop_pre_header
          _
        $region144: #{tpu_custom_call.1} parent=55 // loop_header
          %s824 = sphi %s821, %s826
          %p825 = scmp.ge.s32.totalorder %s824, %s822
        $region145: #{tpu_custom_call.1} parent=55 // loop_header_branch
          %828 = sbr.rel (%p825) target = $region149
        $region146: #{tpu_custom_call.1} parent=55 // loop_body
          %v829 = vld [vmem:[#allocation2 + $0xa] sm:$0x1]
          %s830 = scalar_lea.vmem [#allocation3], %s824
          %v831 = vld [vmem:[%s830] sm:$0x1]
          %v832 = vadd.f32 %v829, %v831
          %833 = vst [vmem:[#allocation2 + $0xa] sm:$0x1] %v832
        $region147: #{tpu_custom_call.1} parent=55 // loop_footer
          %s826 = sadd.s32 %s824, 1
        $region148: #{tpu_custom_call.1} parent=55 // loop_footer_branch
          %823 = sbr.rel target = $region144
        $region149: #{tpu_custom_call.1} parent=55 // loop_exit
          _
        %s834 = sld [smem:[#allocation6 + $0xb]]
        %s835 = sld [smem:[#allocation6 + $0xc]]
        // While loop
        $region150: #{tpu_custom_call.1} parent=55 // loop_pre_header
          _
        $region151: #{tpu_custom_call.1} parent=55 // loop_header
          %s837 = sphi %s834, %s839
          %p838 = scmp.ge.s32.totalorder %s837, %s835
        $region152: #{tpu_custom_call.1} parent=55 // loop_header_branch
          %841 = sbr.rel (%p838) target = $region156
        $region153: #{tpu_custom_call.1} parent=55 // loop_body
          %v842 = vld [vmem:[#allocation2 + $0xb] sm:$0x1]
          %s843 = scalar_lea.vmem [#allocation3], %s837
          %v844 = vld [vmem:[%s843] sm:$0x1]
          %v845 = vadd.f32 %v842, %v844
          %846 = vst [vmem:[#allocation2 + $0xb] sm:$0x1] %v845
        $region154: #{tpu_custom_call.1} parent=55 // loop_footer
          %s839 = sadd.s32 %s837, 1
        $region155: #{tpu_custom_call.1} parent=55 // loop_footer_branch
          %836 = sbr.rel target = $region151
        $region156: #{tpu_custom_call.1} parent=55 // loop_exit
          _
        %s847 = sld [smem:[#allocation6 + $0xc]]
        %s848 = sld [smem:[#allocation6 + $0xd]]
        // While loop
        $region157: #{tpu_custom_call.1} parent=55 // loop_pre_header
          _
        $region158: #{tpu_custom_call.1} parent=55 // loop_header
          %s850 = sphi %s847, %s852
          %p851 = scmp.ge.s32.totalorder %s850, %s848
        $region159: #{tpu_custom_call.1} parent=55 // loop_header_branch
          %854 = sbr.rel (%p851) target = $region163
        $region160: #{tpu_custom_call.1} parent=55 // loop_body
          %v855 = vld [vmem:[#allocation2 + $0xc] sm:$0x1]
          %s856 = scalar_lea.vmem [#allocation3], %s850
          %v857 = vld [vmem:[%s856] sm:$0x1]
          %v858 = vadd.f32 %v855, %v857
          %859 = vst [vmem:[#allocation2 + $0xc] sm:$0x1] %v858
        $region161: #{tpu_custom_call.1} parent=55 // loop_footer
          %s852 = sadd.s32 %s850, 1
        $region162: #{tpu_custom_call.1} parent=55 // loop_footer_branch
          %849 = sbr.rel target = $region158
        $region163: #{tpu_custom_call.1} parent=55 // loop_exit
          _
        %s860 = sld [smem:[#allocation6 + $0xd]]
        %s861 = sld [smem:[#allocation6 + $0xe]]
        // While loop
        $region164: #{tpu_custom_call.1} parent=55 // loop_pre_header
          _
        $region165: #{tpu_custom_call.1} parent=55 // loop_header
          %s863 = sphi %s860, %s865
          %p864 = scmp.ge.s32.totalorder %s863, %s861
        $region166: #{tpu_custom_call.1} parent=55 // loop_header_branch
          %867 = sbr.rel (%p864) target = $region170
        $region167: #{tpu_custom_call.1} parent=55 // loop_body
          %v868 = vld [vmem:[#allocation2 + $0xd] sm:$0x1]
          %s869 = scalar_lea.vmem [#allocation3], %s863
          %v870 = vld [vmem:[%s869] sm:$0x1]
          %v871 = vadd.f32 %v868, %v870
          %872 = vst [vmem:[#allocation2 + $0xd] sm:$0x1] %v871
        $region168: #{tpu_custom_call.1} parent=55 // loop_footer
          %s865 = sadd.s32 %s863, 1
        $region169: #{tpu_custom_call.1} parent=55 // loop_footer_branch
          %862 = sbr.rel target = $region165
        $region170: #{tpu_custom_call.1} parent=55 // loop_exit
          _
        %s873 = sld [smem:[#allocation6 + $0xe]]
        %s874 = sld [smem:[#allocation6 + $0xf]]
        // While loop
        $region171: #{tpu_custom_call.1} parent=55 // loop_pre_header
          _
        $region172: #{tpu_custom_call.1} parent=55 // loop_header
          %s876 = sphi %s873, %s878
          %p877 = scmp.ge.s32.totalorder %s876, %s874
        $region173: #{tpu_custom_call.1} parent=55 // loop_header_branch
          %880 = sbr.rel (%p877) target = $region177
        $region174: #{tpu_custom_call.1} parent=55 // loop_body
          %v881 = vld [vmem:[#allocation2 + $0xe] sm:$0x1]
          %s882 = scalar_lea.vmem [#allocation3], %s876
          %v883 = vld [vmem:[%s882] sm:$0x1]
          %v884 = vadd.f32 %v881, %v883
          %885 = vst [vmem:[#allocation2 + $0xe] sm:$0x1] %v884
        $region175: #{tpu_custom_call.1} parent=55 // loop_footer
          %s878 = sadd.s32 %s876, 1
        $region176: #{tpu_custom_call.1} parent=55 // loop_footer_branch
          %875 = sbr.rel target = $region172
        $region177: #{tpu_custom_call.1} parent=55 // loop_exit
          _
        %s886 = sld [smem:[#allocation6 + $0xf]]
        %s887 = sld [smem:[#allocation6 + $0x10]]
        // While loop
        $region178: #{tpu_custom_call.1} parent=55 // loop_pre_header
          _
        $region179: #{tpu_custom_call.1} parent=55 // loop_header
          %s889 = sphi %s886, %s891
          %p890 = scmp.ge.s32.totalorder %s889, %s887
        $region180: #{tpu_custom_call.1} parent=55 // loop_header_branch
          %893 = sbr.rel (%p890) target = $region184
        $region181: #{tpu_custom_call.1} parent=55 // loop_body
          %v894 = vld [vmem:[#allocation2 + $0xf] sm:$0x1]
          %s895 = scalar_lea.vmem [#allocation3], %s889
          %v896 = vld [vmem:[%s895] sm:$0x1]
          %v897 = vadd.f32 %v894, %v896
          %898 = vst [vmem:[#allocation2 + $0xf] sm:$0x1] %v897
        $region182: #{tpu_custom_call.1} parent=55 // loop_footer
          %s891 = sadd.s32 %s889, 1
        $region183: #{tpu_custom_call.1} parent=55 // loop_footer_branch
          %888 = sbr.rel target = $region179
        $region184: #{tpu_custom_call.1} parent=55 // loop_exit
          _
        %v899 = vld [vmem:[#allocation2] sm:$0xff]
        %v900 = vld [vmem:[#allocation2 + $0x8] sm:$0xff]
        %v901 = vld [vmem:[%s398] sm:$0xff]
        %v902 = vld [vmem:[%s398 + $0x8] sm:$0xff]
        %v903 = vld [vmem:[%s398 + $0x10] sm:$0xff]
        %v904 = vld [vmem:[%s398 + $0x18] sm:$0xff]
        %v905 = vld [vmem:[%s398 + $0x20] sm:$0xff]
        %v906 = vld [vmem:[%s398 + $0x28] sm:$0xff]
        %v907 = vld [vmem:[%s398 + $0x30] sm:$0xff]
        %v908 = vld [vmem:[%s398 + $0x38] sm:$0xff]
        %v909 = vld [vmem:[%s398 + $0x40] sm:$0xff]
        %v910 = vld [vmem:[%s398 + $0x48] sm:$0xff]
        %v911 = vld [vmem:[%s398 + $0x50] sm:$0xff]
        %v912 = vld [vmem:[%s398 + $0x58] sm:$0xff]
        %v913 = vld [vmem:[%s398 + $0x60] sm:$0xff]
        %v914 = vld [vmem:[%s398 + $0x68] sm:$0xff]
        %v915 = vld [vmem:[%s398 + $0x70] sm:$0xff]
        %v916 = vld [vmem:[%s398 + $0x78] sm:$0xff]
        %v917 = vld [vmem:[%s467] sm:$0x1]
        %v919 = vperm.slane %v917, 0
        %921 = vmatpush.msra.mxu0 %v916
        %922 = vmatpush.msra.mxu0 %v915
        %923 = vmatpush.msra.mxu0 %v914
        %924 = vmatpush.msra.mxu0 %v913
        %925 = vmatpush.msra.mxu0 %v912
        %926 = vmatpush.msra.mxu0 %v911
        %927 = vmatpush.msra.mxu0 %v910
        %928 = vmatpush.msra.mxu0 %v909
        %929 = vmatpush.msra.mxu0 %v908
        %930 = vmatpush.msra.mxu0 %v907
        %931 = vmatpush.msra.mxu0 %v906
        %932 = vmatpush.msra.mxu0 %v905
        %933 = vmatpush.msra.mxu0 %v904
        %934 = vmatpush.msra.mxu0 %v903
        %935 = vmatpush.msra.mxu0 %v902
        %936 = vmatpush.msra.mxu0 %v901
        %937 = vmatmul.f32.gmra.mxu0 %v899
        %v938 = vpop.f32.mrf.mxu0
        %v939 = vadd.f32 %v919, %v938
        %940 = vmatmul.f32.gmra.mxu0 %v900
        %v941 = vpop.f32.mrf.mxu0
        %v942 = vadd.f32 %v919, %v941
        %943 = vdwg.mxu0
        %v944 = vmax.f32 %v939, 0.0
        %v945 = vmax.f32 %v942, 0.0
        %v946 = vld [vmem:[%s408] sm:$0xff]
        %v947 = vld [vmem:[%s408 + $0x8] sm:$0xff]
        %v948 = vld [vmem:[%s408 + $0x10] sm:$0xff]
        %v949 = vld [vmem:[%s408 + $0x18] sm:$0xff]
        %v950 = vld [vmem:[%s408 + $0x20] sm:$0xff]
        %v951 = vld [vmem:[%s408 + $0x28] sm:$0xff]
        %v952 = vld [vmem:[%s408 + $0x30] sm:$0xff]
        %v953 = vld [vmem:[%s408 + $0x38] sm:$0xff]
        %v954 = vld [vmem:[%s408 + $0x40] sm:$0xff]
        %v955 = vld [vmem:[%s408 + $0x48] sm:$0xff]
        %v956 = vld [vmem:[%s408 + $0x50] sm:$0xff]
        %v957 = vld [vmem:[%s408 + $0x58] sm:$0xff]
        %v958 = vld [vmem:[%s408 + $0x60] sm:$0xff]
        %v959 = vld [vmem:[%s408 + $0x68] sm:$0xff]
        %v960 = vld [vmem:[%s408 + $0x70] sm:$0xff]
        %v961 = vld [vmem:[%s408 + $0x78] sm:$0xff]
        %v962 = vld [vmem:[%s470] sm:$0x1]
        %v964 = vperm.slane %v962, 0
        %966 = vmatpush.msra.mxu0 %v961
        %967 = vmatpush.msra.mxu0 %v960
        %968 = vmatpush.msra.mxu0 %v959
        %969 = vmatpush.msra.mxu0 %v958
        %970 = vmatpush.msra.mxu0 %v957
        %971 = vmatpush.msra.mxu0 %v956
        %972 = vmatpush.msra.mxu0 %v955
        %973 = vmatpush.msra.mxu0 %v954
        %974 = vmatpush.msra.mxu0 %v953
        %975 = vmatpush.msra.mxu0 %v952
        %976 = vmatpush.msra.mxu0 %v951
        %977 = vmatpush.msra.mxu0 %v950
        %978 = vmatpush.msra.mxu0 %v949
        %979 = vmatpush.msra.mxu0 %v948
        %980 = vmatpush.msra.mxu0 %v947
        %981 = vmatpush.msra.mxu0 %v946
        %982 = vmatmul.f32.gmra.mxu0 %v944
        %v983 = vpop.f32.mrf.mxu0
        %v984 = vadd.f32 %v964, %v983
        %985 = vmatmul.f32.gmra.mxu0 %v945
        %v986 = vpop.f32.mrf.mxu0
        %v987 = vadd.f32 %v964, %v986
        %988 = vdwg.mxu0
        %p989 = scmp.ne.s32.totalorder %s43, 1
        // Predicated region
        $region185: #{tpu_custom_call.1} parent=55 // pred_check
          %p990 = pneg %p989
        $region186: #{tpu_custom_call.1} parent=55 // pred_check_branch
          %992 = sbr.rel (%p990) target = $region188
        $region187: #{tpu_custom_call.1} parent=55 // pred_region
          %v993 = vmax.f32 %v984, 0.0
          %v994 = vmax.f32 %v987, 0.0
          %995 = vst [vmem:[#allocation15] sm:$0xff] %v993
          %996 = vst [vmem:[#allocation15 + $0x8] sm:$0xff] %v994
        $region188: #{tpu_custom_call.1} parent=55 // pred_fallthru
          _
        %p997 = scmp.eq.s32.totalorder %s43, 1
        // Predicated region
        $region189: #{tpu_custom_call.1} parent=55 // pred_check
          %p998 = pneg %p997
        $region190: #{tpu_custom_call.1} parent=55 // pred_check_branch
          %1000 = sbr.rel (%p998) target = $region192
        $region191: #{tpu_custom_call.1} parent=55 // pred_region
          %1001 = vst [vmem:[#allocation15] sm:$0xff] %v984
          %1002 = vst [vmem:[#allocation15 + $0x8] sm:$0xff] %v987
        $region192: #{tpu_custom_call.1} parent=55 // pred_fallthru
          _
        // Predicated region
        $region193: #{tpu_custom_call.1} parent=55 // pred_check
          %p1003 = pneg %p275
        $region194: #{tpu_custom_call.1} parent=55 // pred_check_branch
          %1005 = sbr.rel (%p1003) target = $region196
        $region195: #{tpu_custom_call.1} parent=55 // pred_region
          %1007 = vsyncadd [#allocation10], 0
          %s1008 = sshll.u32 [#allocation15], 4
          %s1009 = int_to_ptr.vmem [resolvable:$true] %s1008
          %s1010 = sshll.u32 %s11, 4
          %s1011 = int_to_ptr.hbm [resolvable:$true] %s1010
          %1016 = dma.vmem_to_hbm [thread:$0]  %s1009, 256, %s1011, [#allocation10], 128, 128, 8
        $region196: #{tpu_custom_call.1} parent=55 // pred_fallthru
          _
        // Predicated region
        $region197: #{tpu_custom_call.1} parent=55 // pred_check
          %p1017 = pneg %p275
        $region198: #{tpu_custom_call.1} parent=55 // pred_check_branch
          %1019 = sbr.rel (%p1017) target = $region200
        $region199: #{tpu_custom_call.1} parent=55 // pred_region
          %1021 = dma.done [#allocation10], 256
        $region200: #{tpu_custom_call.1} parent=55 // pred_fallthru
          _
      $region56: #{tpu_custom_call.1} parent=5 // pred_fallthru
        _
      %p1022 = scmp.le.s32.totalorder 2, %s38
      // Predicated region
      $region201: #{tpu_custom_call.1} parent=5 // pred_check
        %p1023 = pneg %p1022
      $region202: #{tpu_custom_call.1} parent=5 // pred_check_branch
        %1025 = sbr.rel (%p1023) target = $region204
      $region203: #{tpu_custom_call.1} parent=5 // pred_region
        %s1026 = ssub.s32 %s38, 2
      $region204: #{tpu_custom_call.1} parent=5 // pred_fallthru
        _
    $region6: #{tpu_custom_call.1} parent=1 // loop_footer
      %s42 = sadd.s32 1, %s38
    $region7: #{tpu_custom_call.1} parent=1 // loop_footer_branch
      %37 = sbr.rel target = $region3
    $region8: #{tpu_custom_call.1} parent=1 // loop_exit
      _
    %1027 = vsyncpa [#allocation9], 1
    %s1028 = scalar_lea.sflag [#allocation9], 1
    %1029 = vsyncpa %s1028, 1
    %1030 = vsyncpa [#allocation14], 1
    %s1031 = scalar_lea.sflag [#allocation14], 1
    %1032 = vsyncpa %s1031, 1
    %1033 = vsyncpa [#allocation10], 1
    %s1034 = scalar_lea.sflag [#allocation10], 1
    %1035 = vsyncpa %s1034, 1
    %1036 = vsyncpa [#allocation11], 1
    %s1037 = scalar_lea.sflag [#allocation11], 1
    %1038 = vsyncpa %s1037, 1

</llo_original>
